<compile_context>
chip_gen: v7x
topology: tpu7x:2x2x1
jax: 0.10.0
libtpu: 0.0.40
codegen_flags: <defaults>
</compile_context>

<pallas_src>
import functools

import jax
import jax.numpy as jnp
from jax.experimental import pallas as pl
from jax.experimental.pallas import tpu as pltpu

EPS = 1e-5


def _rup(x, m):
    return ((x + m - 1) // m) * m


# ------------------------------ fused kernel --------------------------------


def _depth_corrector_kernel(main_ref, guide_ref, const_ref, pool_ref, w_ref,
                            o_ref, *, W, nbp, cpad, cb, exp_f, rows_fused,
                            opad, off):
    """Whole DepthCorrector forward for one lane-batched chunk of images.

    Activations are (channels, n_images*H*W): channel-major with the batch
    folded onto the lane axis, so every matmul is lane-dense and the chunk is
    processed in a single grid step.
    """
    f32 = jnp.float32
    N = main_ref.shape[1]                       # nb * H * W lanes

    masks = const_ref[0:8, :]                   # (8, N)   3x3 border masks
    seg = const_ref[8:8 + nbp, :]               # (nbp, N) per-image indicator
    pool = pool_ref[...]                        # (N, nbp) per-image avg-pool

    main_t = main_ref[...].astype(f32)          # (cpad, N)
    guide_t = guide_ref[...].astype(f32)        # (cpad, N)

    def wslice(name, rows, width):
        o = off[name]
        return w_ref[0:rows, o:o + width]

    def bias(col, rows):
        o = off["bias"]
        return w_ref[0:rows, o + col:o + col + 1]

    def taps3x3(x):
        # 9 im2col taps built in-register with XLU lane rotations; borders
        # (and image boundaries, since the batch is lane-folded) are masked.
        out, mi = [], 0
        for dy in (-1, 0, 1):
            for dx in (-1, 0, 1):
                d = dy * W + dx
                if d == 0:
                    out.append(x)
                else:
                    shifted = pltpu.roll(x, shift=(-d) % N, axis=1)
                    out.append(shifted * masks[mi:mi + 1, :])
                    mi += 1
        return out

    # Stage 1: feature_conv[0:3] + guide_conv[0:3] fused into one
    # block-diagonal im2col matmul; output rows are already cat([x1, y1]).
    patch = jnp.concatenate(taps3x3(main_t) + taps3x3(guide_t), axis=0)
    feat = jnp.maximum(
        jnp.dot(wslice("f1g1", rows_fused, 18 * cpad), patch,
                preferred_element_type=f32) + bias(0, rows_fused), 0.0)

    # Stage 2: feature_conv[3:6] + guide_conv[3:6] (1x1) fused block-diagonally
    # so the output rows are already cat([x, y], channel).
    xy = jnp.maximum(
        jnp.dot(wslice("fg", cb, rows_fused), feat,
                preferred_element_type=f32) + bias(1, cb), 0.0)

    # Stage 3: SE block at narrow width -- per-image means / gates via small
    # pooling + broadcast matmuls (a plain lane reduction would mix images).
    m = jnp.dot(xy, pool, preferred_element_type=f32)              # (cb, nbp)
    h = jnp.maximum(
        jnp.dot(wslice("se1", cb, cb), m, preferred_element_type=f32), 0.0)
    g = jax.nn.sigmoid(
        jnp.dot(wslice("se2", cb, cb), h, preferred_element_type=f32))
    gate = jnp.dot(g, seg, preferred_element_type=f32)             # (cb, N)
    xy = xy * gate

    # Stage 4: comb_conv 3x3 (+BN+ReLU) as one im2col matmul.
    patch_c = jnp.concatenate(taps3x3(xy), axis=0)                 # (9*cb, N)
    r = jnp.maximum(
        jnp.dot(wslice("c1", exp_f, 9 * cb), patch_c,
                preferred_element_type=f32) + bias(2, exp_f), 0.0)

    # Stage 5: comb_conv 1x1 (+BN+ReLU), output rows padded to cpad.
    r2 = jnp.maximum(
        jnp.dot(wslice("c2", cpad, exp_f), r,
                preferred_element_type=f32) + bias(3, cpad), 0.0)

    # Stage 6: residual add + reduce 1x1, output rows padded to opad so the
    # final store is sublane/lane dense.
    z = r2 + main_t
    out = jnp.dot(wslice("red", opad, cpad), z,
                  preferred_element_type=f32) + bias(4, opad)
    o_ref[...] = out.astype(o_ref.dtype)


# ----------------------- one-time prep (BN folding, packing) ----------------


def _prep3(w_hwio, scale, bias, cin_pad):
    """3x3 conv + folded BN -> (Cout, 9*cin_pad) weight, (Cout, 1) bias."""
    kh, kw, cin, cout = w_hwio.shape
    w = jnp.pad(w_hwio, ((0, 0), (0, 0), (0, cin_pad - cin), (0, 0)))
    w_t = jnp.transpose(w, (3, 0, 1, 2)).reshape(cout, kh * kw * cin_pad)
    return w_t * scale[:, None], bias[:, None]


def _prep1(w_hwio, scale, bias):
    """1x1 conv + folded BN -> (Cout, Cin) weight, (Cout, 1) bias."""
    cin, cout = w_hwio.shape[2], w_hwio.shape[3]
    w_t = w_hwio.reshape(cin, cout).T
    return w_t * scale[:, None], bias[:, None]


def prepare_depth_corrector(p, guide_shape, main_shape):
    """Fold BN, pack every weight/bias into ONE VMEM slab, and precompute the
    border masks + per-image pooling constants.  Call once; the result is
    reused by every depth_corrector_apply call."""
    B, in_f, H, W = main_shape
    guide_f = guide_shape[1]
    HW = H * W
    exp_f = p["f1"][0].shape[3]
    e2 = p["f2"][0].shape[3]
    comb = 2 * e2
    out_f = p["red_w"].shape[1]

    cpad = _rup(max(in_f, guide_f), 8)       # input channels, sublane aligned
    cb = _rup(comb, 8)                       # SE / comb channels
    opad = _rup(out_f, 8)                    # output channels
    rows_fused = 2 * exp_f
    nrows = _rup(max(rows_fused, cb, exp_f, cpad, opad), 8)

    # Images per grid step: fold the batch onto the lane axis, budgeting VMEM
    # conservatively for v7x (64 MiB physical, 32 MiB default scoped).
    bytes_per_lane = 4 * (18 * cpad + 9 * cb + 2 * rows_fused + 4 * cb
                          + 6 * cpad + 2 * opad)
    lane_budget = max(128, (24 << 20) // bytes_per_lane)
    nb = max(1, min(B, lane_budget // max(1, HW)))
    while B % nb:
        nb -= 1
    if (nb * HW) % 128 != 0:
        nb = B                               # single step: block == full array
    # TODO(synk): very large H*W would additionally need a spatial (lane) tile
    # with halo handling; one image per step is assumed to fit VMEM here.
    N = nb * HW
    nbp = _rup(nb, 8)

    # --- constants: 8 border masks, per-image indicators, per-image avg-pool.
    pos = jnp.arange(N, dtype=jnp.int32)
    q = pos % HW
    row, col = q // W, q % W
    mrows = []
    for dy in (-1, 0, 1):
        for dx in (-1, 0, 1):
            if dy == 0 and dx == 0:
                continue
            valid = ((row + dy >= 0) & (row + dy < H) &
                     (col + dx >= 0) & (col + dx < W))
            mrows.append(valid.astype(jnp.float32))
    masks = jnp.stack(mrows, axis=0)                                 # (8, N)
    img = pos // HW
    seg = (img[None, :] == jnp.arange(nbp, dtype=jnp.int32)[:, None]
           ).astype(jnp.float32)                                     # (nbp, N)
    consts = jnp.concatenate([masks, seg], axis=0)                   # (8+nbp, N)
    pool = (seg.T * (1.0 / HW)).astype(jnp.float32)                  # (N, nbp)

    # --- single packed weight/bias slab; each block starts on a lane tile.
    off, cursor = {}, 0
    for name, width in (("f1g1", 18 * cpad), ("c1", 9 * cb),
                        ("fg", rows_fused), ("se1", cb), ("se2", cb),
                        ("c2", exp_f), ("red", cpad), ("bias", 8)):
        off[name] = cursor
        cursor += _rup(width, 128)
    wcols = cursor

    f1w, f1b = _prep3(*p["f1"], cpad)
    g1w, g1b = _prep3(*p["g1"], cpad)
    c1w, c1b = _prep3(*p["c1"], cb)
    f2w, f2b = _prep1(*p["f2"])
    g2w, g2b = _prep1(*p["g2"])
    c2w, c2b = _prep1(*p["c2"])
    se1 = p["se_w1t"].T
    se2 = p["se_w2t"].T
    rw = p["red_w"].T
    rb = p["red_b"]

    Wm = jnp.zeros((nrows, wcols), jnp.float32)
    o = off["f1g1"]
    Wm = Wm.at[0:exp_f, o:o + 9 * cpad].set(f1w)
    Wm = Wm.at[exp_f:2 * exp_f, o + 9 * cpad:o + 18 * cpad].set(g1w)
    o = off["c1"]
    Wm = Wm.at[0:exp_f, o:o + 9 * cb].set(c1w)
    o = off["fg"]
    Wm = Wm.at[0:e2, o:o + exp_f].set(f2w)
    Wm = Wm.at[e2:comb, o + exp_f:o + 2 * exp_f].set(g2w)
    o = off["se1"]
    Wm = Wm.at[0:comb, o:o + comb].set(se1)
    o = off["se2"]
    Wm = Wm.at[0:comb, o:o + comb].set(se2)
    o = off["c2"]
    Wm = Wm.at[0:in_f, o:o + exp_f].set(c2w)
    o = off["red"]
    Wm = Wm.at[0:out_f, o:o + in_f].set(rw)
    o = off["bias"]
    Wm = Wm.at[0:exp_f, o + 0].set(f1b[:, 0])
    Wm = Wm.at[exp_f:2 * exp_f, o + 0].set(g1b[:, 0])
    Wm = Wm.at[0:e2, o + 1].set(f2b[:, 0])
    Wm = Wm.at[e2:comb, o + 1].set(g2b[:, 0])
    Wm = Wm.at[0:exp_f, o + 2].set(c1b[:, 0])
    Wm = Wm.at[0:in_f, o + 3].set(c2b[:, 0])
    Wm = Wm.at[0:out_f, o + 4].set(rb)

    meta = dict(B=B, H=H, W=W, HW=HW, nb=nb, nbp=nbp, N=N,
                in_f=in_f, guide_f=guide_f, out_f=out_f,
                cpad=cpad, cb=cb, opad=opad, exp_f=exp_f,
                rows_fused=rows_fused, off=off)
    return dict(wslab=Wm, consts=consts, pool=pool, meta=meta)


# ------------------------------ forward (Pallas) ------------------------------


def depth_corrector_apply(pack, guide, main):
    """guide: (B, guide_f, H, W), main: (B, in_f, H, W) -- NCHW like PyTorch."""
    meta = pack["meta"]
    B, H, W = meta["B"], meta["H"], meta["W"]
    HW, N, nb = meta["HW"], meta["N"], meta["nb"]
    cpad, opad, out_f = meta["cpad"], meta["opad"], meta["out_f"]
    assert main.shape == (B, meta["in_f"], H, W)
    assert guide.shape == (B, meta["guide_f"], H, W)

    def pack_act(x):
        c = x.shape[1]
        xt = jnp.transpose(x, (1, 0, 2, 3)).reshape(c, B * HW)
        return jnp.pad(xt, ((0, cpad - c), (0, 0)))

    main_p = pack_act(main)
    guide_p = pack_act(guide)

    kern = functools.partial(
        _depth_corrector_kernel, W=W, nbp=meta["nbp"], cpad=cpad,
        cb=meta["cb"], exp_f=meta["exp_f"], rows_fused=meta["rows_fused"],
        opad=opad, off=meta["off"])

    out = pl.pallas_call(
        kern,
        out_shape=jax.ShapeDtypeStruct((opad, B * HW), jnp.float32),
        grid=(B // nb,),
        in_specs=[
            pl.BlockSpec((cpad, N), lambda g: (0, g)),
            pl.BlockSpec((cpad, N), lambda g: (0, g)),
            pl.BlockSpec(pack["consts"].shape, lambda g: (0, 0)),
            pl.BlockSpec(pack["pool"].shape, lambda g: (0, 0)),
            pl.BlockSpec(pack["wslab"].shape, lambda g: (0, 0)),
        ],
        out_specs=pl.BlockSpec((opad, N), lambda g: (0, g)),
        compiler_params=pltpu.CompilerParams(
            dimension_semantics=("parallel",)),
    )(main_p, guide_p, pack["consts"], pack["pool"], pack["wslab"])

    out = out[:out_f].reshape(out_f, B, H, W)
    return jnp.transpose(out, (1, 0, 2, 3)).astype(main.dtype)


# ------------------------------- parameters ----------------------------------


def make_conv_bn(key, kh, kw, cin, cout):
    """Conv(kh,kw,bias) + BatchNorm, folded to (weight HWIO, scale, eff_bias)."""
    k1, k2, k3, k4, k5, k6 = jax.random.split(key, 6)
    w = jax.random.normal(k1, (kh, kw, cin, cout), jnp.float32) * 0.1
    b = jax.random.normal(k2, (cout,), jnp.float32) * 0.05
    gamma = 1.0 + 0.1 * jax.random.normal(k3, (cout,), jnp.float32)
    beta = 0.05 * jax.random.normal(k4, (cout,), jnp.float32)
    mean = 0.05 * jax.random.normal(k5, (cout,), jnp.float32)
    var = 1.0 + 0.1 * jax.random.uniform(k6, (cout,), jnp.float32)
    scale = gamma / jnp.sqrt(var + EPS)
    eff_bias = scale * (b - mean) + beta
    return w, scale, eff_bias


def make_params(key, in_f, exp_f, out_f, guide_f):
    comb = (exp_f // 2) * 2
    ks = jax.random.split(key, 10)
    p = {}
    p["f1"] = make_conv_bn(ks[0], 3, 3, in_f, exp_f)
    p["f2"] = make_conv_bn(ks[1], 1, 1, exp_f, exp_f // 2)
    p["g1"] = make_conv_bn(ks[2], 3, 3, guide_f, exp_f)
    p["g2"] = make_conv_bn(ks[3], 1, 1, exp_f, exp_f // 2)
    p["c1"] = make_conv_bn(ks[4], 3, 3, comb, exp_f)
    p["c2"] = make_conv_bn(ks[5], 1, 1, exp_f, in_f)
    # SELayer(comb, reduction=1): two bias-free Linear(comb, comb); stored (in, out).
    p["se_w1t"] = jax.random.normal(ks[6], (comb, comb), jnp.float32) * 0.2
    p["se_w2t"] = jax.random.normal(ks[7], (comb, comb), jnp.float32) * 0.2
    # reduce: Conv2d(in_f, out_f, 1) with bias; stored (in, out).
    p["red_w"] = jax.random.normal(ks[8], (in_f, out_f), jnp.float32) * 0.1
    p["red_b"] = jax.random.normal(ks[9], (out_f,), jnp.float32) * 0.05
    return p


# ----------------------------- plain-JAX reference ---------------------------

_HI = jax.lax.Precision.HIGHEST


def _conv_bn_relu_ref(x, w, scale, bias, padding):
    y = jax.lax.conv_general_dilated(
        x, w, (1, 1), [(padding, padding)] * 2,
        dimension_numbers=("NCHW", "HWIO", "NCHW"), precision=_HI)
    y = y * scale.reshape(1, -1, 1, 1) + bias.reshape(1, -1, 1, 1)
    return jnp.maximum(y, 0.0)


def depth_corrector_ref(p, guide, main):
    x = _conv_bn_relu_ref(main, *p["f1"], 1)
    x = _conv_bn_relu_ref(x, *p["f2"], 0)
    y = _conv_bn_relu_ref(guide, *p["g1"], 1)
    y = _conv_bn_relu_ref(y, *p["g2"], 0)
    xy = jnp.concatenate([x, y], axis=1)
    m = jnp.mean(xy, axis=(2, 3))
    h = jnp.maximum(jnp.dot(m, p["se_w1t"], precision=_HI), 0.0)
    g = jax.nn.sigmoid(jnp.dot(h, p["se_w2t"], precision=_HI))
    xy = xy * g[:, :, None, None]
    r = _conv_bn_relu_ref(xy, *p["c1"], 1)
    r = _conv_bn_relu_ref(r, *p["c2"], 0)
    z = r + main
    out = jnp.einsum("bihw,io->bohw", z, p["red_w"], precision=_HI)
    return out + p["red_b"].reshape(1, -1, 1, 1)


# ----------------------------------- demo ------------------------------------

if __name__ == "__main__":
    B, in_f, exp_f, out_f, guide_f, H, W = 2, 4, 8, 4, 1, 16, 16

    key = jax.random.PRNGKey(0)
    kp, kg, km = jax.random.split(key, 3)
    params = make_params(kp, in_f, exp_f, out_f, guide_f)

    # PyTorch-convention NCHW inputs; the kernel works channel-major natively.
    guide = jax.random.normal(kg, (B, guide_f, H, W), jnp.float32)
    main = jax.random.normal(km, (B, in_f, H, W), jnp.float32)

    # One-time prep (BN folding, weight packing, constants) -- reused per call.
    pack = prepare_depth_corrector(params, guide.shape, main.shape)

    out = depth_corrector_apply(pack, guide, main)
    out = jax.block_until_ready(out)

    ref = depth_corrector_ref(params, guide, main)
    assert out.shape == (B, out_f, H, W), out.shape
    max_err = float(jnp.max(jnp.abs(out - ref)))
    assert jnp.allclose(out, ref, atol=1e-3, rtol=1e-3), max_err

    print("KERNEL_OK")
</pallas_src>

<mosaic_0001>
module attributes {stable_mosaic.version = 11 : i64} {
  func.func @_depth_corrector_kernel(%arg0: i32, %arg1: memref<8x512xf32, #tpu.memory_space<vmem>>, %arg2: memref<8x512xf32, #tpu.memory_space<vmem>>, %arg3: memref<16x512xf32, #tpu.memory_space<vmem>>, %arg4: memref<512x8xf32, #tpu.memory_space<vmem>>, %arg5: memref<16x1152xf32, #tpu.memory_space<vmem>>, %arg6: memref<8x512xf32, #tpu.memory_space<vmem>>) attributes {dimension_semantics = [#tpu.dimension_semantics<parallel>], iteration_bounds = array<i64: 1>, scalar_prefetch = 0 : i64, scratch_operands = 0 : i64, tpu.core_type = #tpu.core_type<tc>, window_params = [{transform_indices = @transform_0, window_bounds = array<i64: 8, 512>}, {transform_indices = @transform_1, window_bounds = array<i64: 8, 512>}, {pipeline_mode = #tpu.pipeline_mode<synchronous>, transform_indices = @transform_2, window_bounds = array<i64: 16, 512>}, {pipeline_mode = #tpu.pipeline_mode<synchronous>, transform_indices = @transform_3, window_bounds = array<i64: 512, 8>}, {pipeline_mode = #tpu.pipeline_mode<synchronous>, transform_indices = @transform_4, window_bounds = array<i64: 16, 1152>}, {transform_indices = @transform_5, window_bounds = array<i64: 8, 512>}]} {
    %c0 = arith.constant 0 : index
    %c0_0 = arith.constant 0 : index
    %0 = vector.load %arg3[%c0, %c0_0] : memref<16x512xf32, #tpu.memory_space<vmem>>, vector<8x512xf32>
    %c8 = arith.constant 8 : index
    %c0_1 = arith.constant 0 : index
    %1 = vector.load %arg3[%c8, %c0_1] : memref<16x512xf32, #tpu.memory_space<vmem>>, vector<8x512xf32>
    %c0_2 = arith.constant 0 : index
    %c0_3 = arith.constant 0 : index
    %2 = vector.load %arg4[%c0_2, %c0_3] : memref<512x8xf32, #tpu.memory_space<vmem>>, vector<512x8xf32>
    %c0_4 = arith.constant 0 : index
    %c0_5 = arith.constant 0 : index
    %3 = vector.load %arg1[%c0_4, %c0_5] : memref<8x512xf32, #tpu.memory_space<vmem>>, vector<8x512xf32>
    %c0_6 = arith.constant 0 : index
    %c0_7 = arith.constant 0 : index
    %4 = vector.load %arg2[%c0_6, %c0_7] : memref<8x512xf32, #tpu.memory_space<vmem>>, vector<8x512xf32>
    %c17_i32 = arith.constant 17 : i32
    %5 = tpu.dynamic_rotate %3 by %c17_i32 dim 1 : vector<8x512xf32>, i32 -> vector<8x512xf32>
    %6 = vector.extract_strided_slice %0 {offsets = [0, 0], sizes = [1, 512], strides = [1, 1]} : vector<8x512xf32> to vector<1x512xf32>
    %7 = vector.broadcast %6 : vector<1x512xf32> to vector<8x512xf32>
    %8 = arith.mulf %5, %7 : vector<8x512xf32>
    %c16_i32 = arith.constant 16 : i32
    %9 = tpu.dynamic_rotate %3 by %c16_i32 dim 1 : vector<8x512xf32>, i32 -> vector<8x512xf32>
    %10 = vector.extract_strided_slice %0 {offsets = [1, 0], sizes = [1, 512], strides = [1, 1]} : vector<8x512xf32> to vector<1x512xf32>
    %11 = vector.broadcast %10 : vector<1x512xf32> to vector<8x512xf32>
    %12 = arith.mulf %9, %11 : vector<8x512xf32>
    %c15_i32 = arith.constant 15 : i32
    %13 = tpu.dynamic_rotate %3 by %c15_i32 dim 1 : vector<8x512xf32>, i32 -> vector<8x512xf32>
    %14 = vector.extract_strided_slice %0 {offsets = [2, 0], sizes = [1, 512], strides = [1, 1]} : vector<8x512xf32> to vector<1x512xf32>
    %15 = vector.broadcast %14 : vector<1x512xf32> to vector<8x512xf32>
    %16 = arith.mulf %13, %15 : vector<8x512xf32>
    %c1_i32 = arith.constant 1 : i32
    %17 = tpu.dynamic_rotate %3 by %c1_i32 dim 1 : vector<8x512xf32>, i32 -> vector<8x512xf32>
    %18 = vector.extract_strided_slice %0 {offsets = [3, 0], sizes = [1, 512], strides = [1, 1]} : vector<8x512xf32> to vector<1x512xf32>
    %19 = vector.broadcast %18 : vector<1x512xf32> to vector<8x512xf32>
    %20 = arith.mulf %17, %19 : vector<8x512xf32>
    %c511_i32 = arith.constant 511 : i32
    %21 = tpu.dynamic_rotate %3 by %c511_i32 dim 1 : vector<8x512xf32>, i32 -> vector<8x512xf32>
    %22 = vector.extract_strided_slice %0 {offsets = [4, 0], sizes = [1, 512], strides = [1, 1]} : vector<8x512xf32> to vector<1x512xf32>
    %23 = vector.broadcast %22 : vector<1x512xf32> to vector<8x512xf32>
    %24 = arith.mulf %21, %23 : vector<8x512xf32>
    %c497_i32 = arith.constant 497 : i32
    %25 = tpu.dynamic_rotate %3 by %c497_i32 dim 1 : vector<8x512xf32>, i32 -> vector<8x512xf32>
    %26 = vector.extract_strided_slice %0 {offsets = [5, 0], sizes = [1, 512], strides = [1, 1]} : vector<8x512xf32> to vector<1x512xf32>
    %27 = vector.broadcast %26 : vector<1x512xf32> to vector<8x512xf32>
    %28 = arith.mulf %25, %27 : vector<8x512xf32>
    %c496_i32 = arith.constant 496 : i32
    %29 = tpu.dynamic_rotate %3 by %c496_i32 dim 1 : vector<8x512xf32>, i32 -> vector<8x512xf32>
    %30 = vector.extract_strided_slice %0 {offsets = [6, 0], sizes = [1, 512], strides = [1, 1]} : vector<8x512xf32> to vector<1x512xf32>
    %31 = vector.broadcast %30 : vector<1x512xf32> to vector<8x512xf32>
    %32 = arith.mulf %29, %31 : vector<8x512xf32>
    %c495_i32 = arith.constant 495 : i32
    %33 = tpu.dynamic_rotate %3 by %c495_i32 dim 1 : vector<8x512xf32>, i32 -> vector<8x512xf32>
    %34 = vector.extract_strided_slice %0 {offsets = [7, 0], sizes = [1, 512], strides = [1, 1]} : vector<8x512xf32> to vector<1x512xf32>
    %35 = vector.broadcast %34 : vector<1x512xf32> to vector<8x512xf32>
    %36 = arith.mulf %33, %35 : vector<8x512xf32>
    %c17_i32_8 = arith.constant 17 : i32
    %37 = tpu.dynamic_rotate %4 by %c17_i32_8 dim 1 : vector<8x512xf32>, i32 -> vector<8x512xf32>
    %38 = vector.extract_strided_slice %0 {offsets = [0, 0], sizes = [1, 512], strides = [1, 1]} : vector<8x512xf32> to vector<1x512xf32>
    %39 = vector.broadcast %38 : vector<1x512xf32> to vector<8x512xf32>
    %40 = arith.mulf %37, %39 : vector<8x512xf32>
    %c16_i32_9 = arith.constant 16 : i32
    %41 = tpu.dynamic_rotate %4 by %c16_i32_9 dim 1 : vector<8x512xf32>, i32 -> vector<8x512xf32>
    %42 = vector.extract_strided_slice %0 {offsets = [1, 0], sizes = [1, 512], strides = [1, 1]} : vector<8x512xf32> to vector<1x512xf32>
    %43 = vector.broadcast %42 : vector<1x512xf32> to vector<8x512xf32>
    %44 = arith.mulf %41, %43 : vector<8x512xf32>
    %c15_i32_10 = arith.constant 15 : i32
    %45 = tpu.dynamic_rotate %4 by %c15_i32_10 dim 1 : vector<8x512xf32>, i32 -> vector<8x512xf32>
    %46 = vector.extract_strided_slice %0 {offsets = [2, 0], sizes = [1, 512], strides = [1, 1]} : vector<8x512xf32> to vector<1x512xf32>
    %47 = vector.broadcast %46 : vector<1x512xf32> to vector<8x512xf32>
    %48 = arith.mulf %45, %47 : vector<8x512xf32>
    %c1_i32_11 = arith.constant 1 : i32
    %49 = tpu.dynamic_rotate %4 by %c1_i32_11 dim 1 : vector<8x512xf32>, i32 -> vector<8x512xf32>
    %50 = vector.extract_strided_slice %0 {offsets = [3, 0], sizes = [1, 512], strides = [1, 1]} : vector<8x512xf32> to vector<1x512xf32>
    %51 = vector.broadcast %50 : vector<1x512xf32> to vector<8x512xf32>
    %52 = arith.mulf %49, %51 : vector<8x512xf32>
    %c511_i32_12 = arith.constant 511 : i32
    %53 = tpu.dynamic_rotate %4 by %c511_i32_12 dim 1 : vector<8x512xf32>, i32 -> vector<8x512xf32>
    %54 = vector.extract_strided_slice %0 {offsets = [4, 0], sizes = [1, 512], strides = [1, 1]} : vector<8x512xf32> to vector<1x512xf32>
    %55 = vector.broadcast %54 : vector<1x512xf32> to vector<8x512xf32>
    %56 = arith.mulf %53, %55 : vector<8x512xf32>
    %c497_i32_13 = arith.constant 497 : i32
    %57 = tpu.dynamic_rotate %4 by %c497_i32_13 dim 1 : vector<8x512xf32>, i32 -> vector<8x512xf32>
    %58 = vector.extract_strided_slice %0 {offsets = [5, 0], sizes = [1, 512], strides = [1, 1]} : vector<8x512xf32> to vector<1x512xf32>
    %59 = vector.broadcast %58 : vector<1x512xf32> to vector<8x512xf32>
    %60 = arith.mulf %57, %59 : vector<8x512xf32>
    %c496_i32_14 = arith.constant 496 : i32
    %61 = tpu.dynamic_rotate %4 by %c496_i32_14 dim 1 : vector<8x512xf32>, i32 -> vector<8x512xf32>
    %62 = vector.extract_strided_slice %0 {offsets = [6, 0], sizes = [1, 512], strides = [1, 1]} : vector<8x512xf32> to vector<1x512xf32>
    %63 = vector.broadcast %62 : vector<1x512xf32> to vector<8x512xf32>
    %64 = arith.mulf %61, %63 : vector<8x512xf32>
    %c495_i32_15 = arith.constant 495 : i32
    %65 = tpu.dynamic_rotate %4 by %c495_i32_15 dim 1 : vector<8x512xf32>, i32 -> vector<8x512xf32>
    %66 = vector.extract_strided_slice %0 {offsets = [7, 0], sizes = [1, 512], strides = [1, 1]} : vector<8x512xf32> to vector<1x512xf32>
    %67 = vector.broadcast %66 : vector<1x512xf32> to vector<8x512xf32>
    %68 = arith.mulf %65, %67 : vector<8x512xf32>
    %69 = tpu.concatenate %8, %12, %16, %20, %3, %24, %28, %32, %36, %40, %44, %48, %52, %4, %56, %60 in 0 : vector<8x512xf32>, vector<8x512xf32>, vector<8x512xf32>, vector<8x512xf32>, vector<8x512xf32>, vector<8x512xf32>, vector<8x512xf32>, vector<8x512xf32>, vector<8x512xf32>, vector<8x512xf32>, vector<8x512xf32>, vector<8x512xf32>, vector<8x512xf32>, vector<8x512xf32>, vector<8x512xf32>, vector<8x512xf32> -> vector<128x512xf32>
    %70 = tpu.concatenate %64, %68 in 0 : vector<8x512xf32>, vector<8x512xf32> -> vector<16x512xf32>
    %71 = tpu.concatenate %69, %70 in 0 : vector<128x512xf32>, vector<16x512xf32> -> vector<144x512xf32>
    %c0_16 = arith.constant 0 : index
    %c0_17 = arith.constant 0 : index
    %72 = vector.load %arg5[%c0_16, %c0_17] : memref<16x1152xf32, #tpu.memory_space<vmem>>, vector<16x144xf32>
    %cst = arith.constant dense<0.000000e+00> : vector<16x512xf32>
    %73 = tpu.matmul %72, %71, %cst {dimension_numbers = #tpu.dot_dimension_numbers<[1], [0], [0], [1], [0, 0, 1, 1], [], []>} : vector<16x144xf32>, vector<144x512xf32>, vector<16x512xf32> -> vector<16x512xf32>
    %c0_18 = arith.constant 0 : index
    %c1024 = arith.constant 1024 : index
    %74 = vector.load %arg5[%c0_18, %c1024] : memref<16x1152xf32, #tpu.memory_space<vmem>>, vector<16x1xf32>
    %75 = vector.broadcast %74 : vector<16x1xf32> to vector<16x512xf32>
    %76 = arith.addf %73, %75 : vector<16x512xf32>
    %cst_19 = arith.constant 0.000000e+00 : f32
    %77 = vector.broadcast %cst_19 : f32 to vector<16x512xf32>
    %78 = arith.maximumf %76, %77 : vector<16x512xf32>
    %c0_20 = arith.constant 0 : index
    %c384 = arith.constant 384 : index
    %79 = vector.load %arg5[%c0_20, %c384] : memref<16x1152xf32, #tpu.memory_space<vmem>>, vector<8x16xf32>
    %cst_21 = arith.constant dense<0.000000e+00> : vector<8x512xf32>
    %80 = tpu.matmul %79, %78, %cst_21 {dimension_numbers = #tpu.dot_dimension_numbers<[1], [0], [0], [1], [0, 0, 1, 1], [], []>} : vector<8x16xf32>, vector<16x512xf32>, vector<8x512xf32> -> vector<8x512xf32>
    %c0_22 = arith.constant 0 : index
    %c1025 = arith.constant 1025 : index
    %81 = vector.load %arg5[%c0_22, %c1025] : memref<16x1152xf32, #tpu.memory_space<vmem>>, vector<8x1xf32>
    %82 = vector.broadcast %81 : vector<8x1xf32> to vector<8x512xf32>
    %83 = arith.addf %80, %82 : vector<8x512xf32>
    %cst_23 = arith.constant 0.000000e+00 : f32
    %84 = vector.broadcast %cst_23 : f32 to vector<8x512xf32>
    %85 = arith.maximumf %83, %84 : vector<8x512xf32>
    %cst_24 = arith.constant dense<0.000000e+00> : vector<8x8xf32>
    %86 = tpu.matmul %85, %2, %cst_24 {dimension_numbers = #tpu.dot_dimension_numbers<[1], [0], [0], [1], [0, 0, 1, 1], [], []>} : vector<8x512xf32>, vector<512x8xf32>, vector<8x8xf32> -> vector<8x8xf32>
    %c0_25 = arith.constant 0 : index
    %c512 = arith.constant 512 : index
    %87 = vector.load %arg5[%c0_25, %c512] : memref<16x1152xf32, #tpu.memory_space<vmem>>, vector<8x8xf32>
    %cst_26 = arith.constant dense<0.000000e+00> : vector<8x8xf32>
    %88 = tpu.matmul %87, %86, %cst_26 {dimension_numbers = #tpu.dot_dimension_numbers<[1], [0], [0], [1], [0, 0, 1, 1], [], []>} : vector<8x8xf32>, vector<8x8xf32>, vector<8x8xf32> -> vector<8x8xf32>
    %cst_27 = arith.constant 0.000000e+00 : f32
    %89 = vector.broadcast %cst_27 : f32 to vector<8x8xf32>
    %90 = arith.maximumf %88, %89 : vector<8x8xf32>
    %c0_28 = arith.constant 0 : index
    %c640 = arith.constant 640 : index
    %91 = vector.load %arg5[%c0_28, %c640] : memref<16x1152xf32, #tpu.memory_space<vmem>>, vector<8x8xf32>
    %cst_29 = arith.constant dense<0.000000e+00> : vector<8x8xf32>
    %92 = tpu.matmul %91, %90, %cst_29 {dimension_numbers = #tpu.dot_dimension_numbers<[1], [0], [0], [1], [0, 0, 1, 1], [], []>} : vector<8x8xf32>, vector<8x8xf32>, vector<8x8xf32> -> vector<8x8xf32>
    %93 = arith.negf %92 : vector<8x8xf32>
    %94 = math.exp %93 : vector<8x8xf32>
    %cst_30 = arith.constant 1.000000e+00 : f32
    %95 = vector.broadcast %cst_30 : f32 to vector<8x8xf32>
    %96 = arith.addf %95, %94 : vector<8x8xf32>
    %97 = arith.divf %95, %96 : vector<8x8xf32>
    %cst_31 = arith.constant dense<0.000000e+00> : vector<8x512xf32>
    %98 = tpu.matmul %97, %1, %cst_31 {dimension_numbers = #tpu.dot_dimension_numbers<[1], [0], [0], [1], [0, 0, 1, 1], [], []>} : vector<8x8xf32>, vector<8x512xf32>, vector<8x512xf32> -> vector<8x512xf32>
    %99 = arith.mulf %85, %98 : vector<8x512xf32>
    %c17_i32_32 = arith.constant 17 : i32
    %100 = tpu.dynamic_rotate %99 by %c17_i32_32 dim 1 : vector<8x512xf32>, i32 -> vector<8x512xf32>
    %101 = vector.extract_strided_slice %0 {offsets = [0, 0], sizes = [1, 512], strides = [1, 1]} : vector<8x512xf32> to vector<1x512xf32>
    %102 = vector.broadcast %101 : vector<1x512xf32> to vector<8x512xf32>
    %103 = arith.mulf %100, %102 : vector<8x512xf32>
    %c16_i32_33 = arith.constant 16 : i32
    %104 = tpu.dynamic_rotate %99 by %c16_i32_33 dim 1 : vector<8x512xf32>, i32 -> vector<8x512xf32>
    %105 = vector.extract_strided_slice %0 {offsets = [1, 0], sizes = [1, 512], strides = [1, 1]} : vector<8x512xf32> to vector<1x512xf32>
    %106 = vector.broadcast %105 : vector<1x512xf32> to vector<8x512xf32>
    %107 = arith.mulf %104, %106 : vector<8x512xf32>
    %c15_i32_34 = arith.constant 15 : i32
    %108 = tpu.dynamic_rotate %99 by %c15_i32_34 dim 1 : vector<8x512xf32>, i32 -> vector<8x512xf32>
    %109 = vector.extract_strided_slice %0 {offsets = [2, 0], sizes = [1, 512], strides = [1, 1]} : vector<8x512xf32> to vector<1x512xf32>
    %110 = vector.broadcast %109 : vector<1x512xf32> to vector<8x512xf32>
    %111 = arith.mulf %108, %110 : vector<8x512xf32>
    %c1_i32_35 = arith.constant 1 : i32
    %112 = tpu.dynamic_rotate %99 by %c1_i32_35 dim 1 : vector<8x512xf32>, i32 -> vector<8x512xf32>
    %113 = vector.extract_strided_slice %0 {offsets = [3, 0], sizes = [1, 512], strides = [1, 1]} : vector<8x512xf32> to vector<1x512xf32>
    %114 = vector.broadcast %113 : vector<1x512xf32> to vector<8x512xf32>
    %115 = arith.mulf %112, %114 : vector<8x512xf32>
    %c511_i32_36 = arith.constant 511 : i32
    %116 = tpu.dynamic_rotate %99 by %c511_i32_36 dim 1 : vector<8x512xf32>, i32 -> vector<8x512xf32>
    %117 = vector.extract_strided_slice %0 {offsets = [4, 0], sizes = [1, 512], strides = [1, 1]} : vector<8x512xf32> to vector<1x512xf32>
    %118 = vector.broadcast %117 : vector<1x512xf32> to vector<8x512xf32>
    %119 = arith.mulf %116, %118 : vector<8x512xf32>
    %c497_i32_37 = arith.constant 497 : i32
    %120 = tpu.dynamic_rotate %99 by %c497_i32_37 dim 1 : vector<8x512xf32>, i32 -> vector<8x512xf32>
    %121 = vector.extract_strided_slice %0 {offsets = [5, 0], sizes = [1, 512], strides = [1, 1]} : vector<8x512xf32> to vector<1x512xf32>
    %122 = vector.broadcast %121 : vector<1x512xf32> to vector<8x512xf32>
    %123 = arith.mulf %120, %122 : vector<8x512xf32>
    %c496_i32_38 = arith.constant 496 : i32
    %124 = tpu.dynamic_rotate %99 by %c496_i32_38 dim 1 : vector<8x512xf32>, i32 -> vector<8x512xf32>
    %125 = vector.extract_strided_slice %0 {offsets = [6, 0], sizes = [1, 512], strides = [1, 1]} : vector<8x512xf32> to vector<1x512xf32>
    %126 = vector.broadcast %125 : vector<1x512xf32> to vector<8x512xf32>
    %127 = arith.mulf %124, %126 : vector<8x512xf32>
    %c495_i32_39 = arith.constant 495 : i32
    %128 = tpu.dynamic_rotate %99 by %c495_i32_39 dim 1 : vector<8x512xf32>, i32 -> vector<8x512xf32>
    %129 = vector.extract_strided_slice %0 {offsets = [7, 0], sizes = [1, 512], strides = [1, 1]} : vector<8x512xf32> to vector<1x512xf32>
    %130 = vector.broadcast %129 : vector<1x512xf32> to vector<8x512xf32>
    %131 = arith.mulf %128, %130 : vector<8x512xf32>
    %132 = tpu.concatenate %103, %107, %111, %115, %99, %119, %123, %127, %131 in 0 : vector<8x512xf32>, vector<8x512xf32>, vector<8x512xf32>, vector<8x512xf32>, vector<8x512xf32>, vector<8x512xf32>, vector<8x512xf32>, vector<8x512xf32>, vector<8x512xf32> -> vector<72x512xf32>
    %c0_40 = arith.constant 0 : index
    %c256 = arith.constant 256 : index
    %133 = vector.load %arg5[%c0_40, %c256] : memref<16x1152xf32, #tpu.memory_space<vmem>>, vector<8x72xf32>
    %cst_41 = arith.constant dense<0.000000e+00> : vector<8x512xf32>
    %134 = tpu.matmul %133, %132, %cst_41 {dimension_numbers = #tpu.dot_dimension_numbers<[1], [0], [0], [1], [0, 0, 1, 1], [], []>} : vector<8x72xf32>, vector<72x512xf32>, vector<8x512xf32> -> vector<8x512xf32>
    %c0_42 = arith.constant 0 : index
    %c1026 = arith.constant 1026 : index
    %135 = vector.load %arg5[%c0_42, %c1026] : memref<16x1152xf32, #tpu.memory_space<vmem>>, vector<8x1xf32>
    %136 = vector.broadcast %135 : vector<8x1xf32> to vector<8x512xf32>
    %137 = arith.addf %134, %136 : vector<8x512xf32>
    %cst_43 = arith.constant 0.000000e+00 : f32
    %138 = vector.broadcast %cst_43 : f32 to vector<8x512xf32>
    %139 = arith.maximumf %137, %138 : vector<8x512xf32>
    %c0_44 = arith.constant 0 : index
    %c768 = arith.constant 768 : index
    %140 = vector.load %arg5[%c0_44, %c768] : memref<16x1152xf32, #tpu.memory_space<vmem>>, vector<8x8xf32>
    %cst_45 = arith.constant dense<0.000000e+00> : vector<8x512xf32>
    %141 = tpu.matmul %140, %139, %cst_45 {dimension_numbers = #tpu.dot_dimension_numbers<[1], [0], [0], [1], [0, 0, 1, 1], [], []>} : vector<8x8xf32>, vector<8x512xf32>, vector<8x512xf32> -> vector<8x512xf32>
    %c0_46 = arith.constant 0 : index
    %c1027 = arith.constant 1027 : index
    %142 = vector.load %arg5[%c0_46, %c1027] : memref<16x1152xf32, #tpu.memory_space<vmem>>, vector<8x1xf32>
    %143 = vector.broadcast %142 : vector<8x1xf32> to vector<8x512xf32>
    %144 = arith.addf %141, %143 : vector<8x512xf32>
    %cst_47 = arith.constant 0.000000e+00 : f32
    %145 = vector.broadcast %cst_47 : f32 to vector<8x512xf32>
    %146 = arith.maximumf %144, %145 : vector<8x512xf32>
    %147 = arith.addf %146, %3 : vector<8x512xf32>
    %c0_48 = arith.constant 0 : index
    %c896 = arith.constant 896 : index
    %148 = vector.load %arg5[%c0_48, %c896] : memref<16x1152xf32, #tpu.memory_space<vmem>>, vector<8x8xf32>
    %cst_49 = arith.constant dense<0.000000e+00> : vector<8x512xf32>
    %149 = tpu.matmul %148, %147, %cst_49 {dimension_numbers = #tpu.dot_dimension_numbers<[1], [0], [0], [1], [0, 0, 1, 1], [], []>} : vector<8x8xf32>, vector<8x512xf32>, vector<8x512xf32> -> vector<8x512xf32>
    %c0_50 = arith.constant 0 : index
    %c1028 = arith.constant 1028 : index
    %150 = vector.load %arg5[%c0_50, %c1028] : memref<16x1152xf32, #tpu.memory_space<vmem>>, vector<8x1xf32>
    %151 = vector.broadcast %150 : vector<8x1xf32> to vector<8x512xf32>
    %152 = arith.addf %149, %151 : vector<8x512xf32>
    %c0_51 = arith.constant 0 : index
    %c0_52 = arith.constant 0 : index
    %153 = vector.load %arg6[%c0_51, %c0_52] : memref<8x512xf32, #tpu.memory_space<vmem>>, vector<8x512xf32>
    tpu.vector_store %arg6[%c0_51, %c0_52], %152 {strides = array<i32>} : memref<8x512xf32, #tpu.memory_space<vmem>>, vector<8x512xf32>,
    return
  }
  func.func @transform_0(%arg0: i32) -> (i32, i32) {
    %c0_i32 = arith.constant 0 : i32
    %c0_i32_0 = arith.constant 0 : i32
    return %c0_i32, %arg0 : i32, i32
  }
  func.func @transform_1(%arg0: i32) -> (i32, i32) {
    %c0_i32 = arith.constant 0 : i32
    %c0_i32_0 = arith.constant 0 : i32
    return %c0_i32, %arg0 : i32, i32
  }
  func.func @transform_2(%arg0: i32) -> (i32, i32) {
    %c0_i32 = arith.constant 0 : i32
    %c0_i32_0 = arith.constant 0 : i32
    %c0_i32_1 = arith.constant 0 : i32
    return %c0_i32, %c0_i32_0 : i32, i32
  }
  func.func @transform_3(%arg0: i32) -> (i32, i32) {
    %c0_i32 = arith.constant 0 : i32
    %c0_i32_0 = arith.constant 0 : i32
    %c0_i32_1 = arith.constant 0 : i32
    return %c0_i32, %c0_i32_0 : i32, i32
  }
  func.func @transform_4(%arg0: i32) -> (i32, i32) {
    %c0_i32 = arith.constant 0 : i32
    %c0_i32_0 = arith.constant 0 : i32
    %c0_i32_1 = arith.constant 0 : i32
    return %c0_i32, %c0_i32_0 : i32, i32
  }
  func.func @transform_5(%arg0: i32) -> (i32, i32) {
    %c0_i32 = arith.constant 0 : i32
    %c0_i32_0 = arith.constant 0 : i32
    return %c0_i32, %arg0 : i32, i32
  }
}

</mosaic_0001>

<llo_original>
// kernel: tpu_custom_call.1
$region0: #{tpu_custom_call.1}
  #allocation0 [shape = 'u32[]', space=smem, size = 0x4, offset = 0x4, fixed_abs, tag = 'smem constant byte address 0x4 - core index']
  #allocation1 [shape = 'u32[144,128]{1,0:T(1,128)}', space=vmem, size = 0x12000, scoped, tag = 'internal scratch']
  %s0 = inlined_call_operand.vmem [shape: f32[8,512], index: 0, kind: input, shape index: {}]
  %s1 = inlined_call_operand.vmem [shape: f32[8,512], index: 1, kind: input, shape index: {}]
  %s2 = inlined_call_operand.vmem [shape: f32[16,512], index: 2, kind: input, shape index: {}]
  %s3 = inlined_call_operand.vmem [shape: f32[512,8], index: 3, kind: input, shape index: {}]
  %s4 = inlined_call_operand.vmem [shape: f32[16,1152], index: 4, kind: input, shape index: {}]
  %s5 = inlined_call_operand.hbm [shape: f32[8,512], index: 5, kind: output, shape index: {}]
  %s6 = sld [smem:[#allocation0]]
  $region30: #{tpu_custom_call.1} parent=0
    _
  %s8 = ssub.s32 1, %s6
  %s9 = scalar_select 0, %s8, %s6
  $region1: #{tpu_custom_call.1} parent=0
    #allocation2 [shape = 'u8[16384]{0}', space=vmem, size = 0x4000, scoped, tag = 'output window, operand 0, single buffered']
    #allocation3 [shape = 's32[1]{0}', space=sflag, size = 0x4, scoped, tag = 'scoped memory for tpu_custom_call.1']
    %10 = vsyncpa [#allocation3], 0
    // Predicated region
    $region2: #{tpu_custom_call.1} parent=1 // pred_check
      _
    $region3: #{tpu_custom_call.1} parent=1 // pred_check_branch
      %12 = sbr.rel (0) target = $region5
    $region4: #{tpu_custom_call.1} parent=1 // pred_region
      _
    $region5: #{tpu_custom_call.1} parent=1 // pred_fallthru
      _
    // Predicated region
    $region6: #{tpu_custom_call.1} parent=1 // pred_check
      _
    $region7: #{tpu_custom_call.1} parent=1 // pred_check_branch
      %14 = sbr.rel (0) target = $region9
    $region8: #{tpu_custom_call.1} parent=1 // pred_region
      _
    $region9: #{tpu_custom_call.1} parent=1 // pred_fallthru
      _
    // Predicated region
    $region10: #{tpu_custom_call.1} parent=1 // pred_check
      _
    $region11: #{tpu_custom_call.1} parent=1 // pred_check_branch
      %16 = sbr.rel (0) target = $region13
    $region12: #{tpu_custom_call.1} parent=1 // pred_region
      _
    $region13: #{tpu_custom_call.1} parent=1 // pred_fallthru
      _
    // Predicated region
    $region14: #{tpu_custom_call.1} parent=1 // pred_check
      _
    $region15: #{tpu_custom_call.1} parent=1 // pred_check_branch
      %18 = sbr.rel (0) target = $region17
    $region16: #{tpu_custom_call.1} parent=1 // pred_region
      _
    $region17: #{tpu_custom_call.1} parent=1 // pred_fallthru
      _
    // Predicated region
    $region18: #{tpu_custom_call.1} parent=1 // pred_check
      _
    $region19: #{tpu_custom_call.1} parent=1 // pred_check_branch
      %20 = sbr.rel (0) target = $region21
    $region20: #{tpu_custom_call.1} parent=1 // pred_region
      _
    $region21: #{tpu_custom_call.1} parent=1 // pred_fallthru
      _
    %v21 = vld [vmem:[%s2] sm:$0xff]
    %v22 = vld [vmem:[%s2 + $0x8] sm:$0xff]
    %v23 = vld [vmem:[%s2 + $0x10] sm:$0xff]
    %v24 = vld [vmem:[%s2 + $0x18] sm:$0xff]
    %v25 = vld [vmem:[%s2 + $0x20] sm:$0xff]
    %v26 = vld [vmem:[%s2 + $0x28] sm:$0xff]
    %v27 = vld [vmem:[%s2 + $0x30] sm:$0xff]
    %v28 = vld [vmem:[%s2 + $0x38] sm:$0xff]
    %v29 = vld [vmem:[%s3] sm:$0xff]
    %v30 = vld [vmem:[%s3 + $0x8] sm:$0xff]
    %v31 = vld [vmem:[%s3 + $0x10] sm:$0xff]
    %v32 = vld [vmem:[%s3 + $0x18] sm:$0xff]
    %v33 = vld [vmem:[%s3 + $0x20] sm:$0xff]
    %v34 = vld [vmem:[%s3 + $0x28] sm:$0xff]
    %v35 = vld [vmem:[%s3 + $0x30] sm:$0xff]
    %v36 = vld [vmem:[%s3 + $0x38] sm:$0xff]
    %v37 = vld [vmem:[%s3 + $0x40] sm:$0xff]
    %v38 = vld [vmem:[%s3 + $0x48] sm:$0xff]
    %v39 = vld [vmem:[%s3 + $0x50] sm:$0xff]
    %v40 = vld [vmem:[%s3 + $0x58] sm:$0xff]
    %v41 = vld [vmem:[%s3 + $0x60] sm:$0xff]
    %v42 = vld [vmem:[%s3 + $0x68] sm:$0xff]
    %v43 = vld [vmem:[%s3 + $0x70] sm:$0xff]
    %v44 = vld [vmem:[%s3 + $0x78] sm:$0xff]
    %v45 = vld [vmem:[%s3 + $0x80] sm:$0xff]
    %v46 = vld [vmem:[%s3 + $0x88] sm:$0xff]
    %v47 = vld [vmem:[%s3 + $0x90] sm:$0xff]
    %v48 = vld [vmem:[%s3 + $0x98] sm:$0xff]
    %v49 = vld [vmem:[%s3 + $0xa0] sm:$0xff]
    %v50 = vld [vmem:[%s3 + $0xa8] sm:$0xff]
    %v51 = vld [vmem:[%s3 + $0xb0] sm:$0xff]
    %v52 = vld [vmem:[%s3 + $0xb8] sm:$0xff]
    %v53 = vld [vmem:[%s3 + $0xc0] sm:$0xff]
    %v54 = vld [vmem:[%s3 + $0xc8] sm:$0xff]
    %v55 = vld [vmem:[%s3 + $0xd0] sm:$0xff]
    %v56 = vld [vmem:[%s3 + $0xd8] sm:$0xff]
    %v57 = vld [vmem:[%s3 + $0xe0] sm:$0xff]
    %v58 = vld [vmem:[%s3 + $0xe8] sm:$0xff]
    %v59 = vld [vmem:[%s3 + $0xf0] sm:$0xff]
    %v60 = vld [vmem:[%s3 + $0xf8] sm:$0xff]
    %v61 = vld [vmem:[%s3 + $0x100] sm:$0xff]
    %v62 = vld [vmem:[%s3 + $0x108] sm:$0xff]
    %v63 = vld [vmem:[%s3 + $0x110] sm:$0xff]
    %v64 = vld [vmem:[%s3 + $0x118] sm:$0xff]
    %v65 = vld [vmem:[%s3 + $0x120] sm:$0xff]
    %v66 = vld [vmem:[%s3 + $0x128] sm:$0xff]
    %v67 = vld [vmem:[%s3 + $0x130] sm:$0xff]
    %v68 = vld [vmem:[%s3 + $0x138] sm:$0xff]
    %v69 = vld [vmem:[%s3 + $0x140] sm:$0xff]
    %v70 = vld [vmem:[%s3 + $0x148] sm:$0xff]
    %v71 = vld [vmem:[%s3 + $0x150] sm:$0xff]
    %v72 = vld [vmem:[%s3 + $0x158] sm:$0xff]
    %v73 = vld [vmem:[%s3 + $0x160] sm:$0xff]
    %v74 = vld [vmem:[%s3 + $0x168] sm:$0xff]
    %v75 = vld [vmem:[%s3 + $0x170] sm:$0xff]
    %v76 = vld [vmem:[%s3 + $0x178] sm:$0xff]
    %v77 = vld [vmem:[%s3 + $0x180] sm:$0xff]
    %v78 = vld [vmem:[%s3 + $0x188] sm:$0xff]
    %v79 = vld [vmem:[%s3 + $0x190] sm:$0xff]
    %v80 = vld [vmem:[%s3 + $0x198] sm:$0xff]
    %v81 = vld [vmem:[%s3 + $0x1a0] sm:$0xff]
    %v82 = vld [vmem:[%s3 + $0x1a8] sm:$0xff]
    %v83 = vld [vmem:[%s3 + $0x1b0] sm:$0xff]
    %v84 = vld [vmem:[%s3 + $0x1b8] sm:$0xff]
    %v85 = vld [vmem:[%s3 + $0x1c0] sm:$0xff]
    %v86 = vld [vmem:[%s3 + $0x1c8] sm:$0xff]
    %v87 = vld [vmem:[%s3 + $0x1d0] sm:$0xff]
    %v88 = vld [vmem:[%s3 + $0x1d8] sm:$0xff]
    %v89 = vld [vmem:[%s3 + $0x1e0] sm:$0xff]
    %v90 = vld [vmem:[%s3 + $0x1e8] sm:$0xff]
    %v91 = vld [vmem:[%s3 + $0x1f0] sm:$0xff]
    %v92 = vld [vmem:[%s3 + $0x1f8] sm:$0xff]
    %v93 = vld [vmem:[%s0] sm:$0xff]
    %v94 = vld [vmem:[%s0 + $0x8] sm:$0xff]
    %v95 = vld [vmem:[%s0 + $0x10] sm:$0xff]
    %v96 = vld [vmem:[%s0 + $0x18] sm:$0xff]
    %v97 = vld [vmem:[%s1] sm:$0xff]
    %v98 = vld [vmem:[%s1 + $0x8] sm:$0xff]
    %v99 = vld [vmem:[%s1 + $0x10] sm:$0xff]
    %v100 = vld [vmem:[%s1 + $0x18] sm:$0xff]
    %101 = vrot.lane.b32.xlu0 %v93, 17
    %v102 = vpop.permute.xlu0 %101
    %103 = vrot.lane.b32.xlu0 %v94, 17
    %v104 = vpop.permute.xlu0 %103
    %105 = vrot.lane.b32.xlu0 %v95, 17
    %v106 = vpop.permute.xlu0 %105
    %107 = vrot.lane.b32.xlu0 %v96, 17
    %v108 = vpop.permute.xlu0 %107
    %v109 = vlaneseq
    %v110 = vand.u32 %v109, 127
    %vm111 = vcmp.lt.s32.totalorder %v110, 17
    %v112 = vsel %vm111, %v106, %v108
    %v113 = vsel %vm111, %v104, %v106
    %v114 = vsel %vm111, %v102, %v104
    %v115 = vsel %vm111, %v108, %v102
    %v116 = vlaneseq
    %v117 = vshrl.u32 %v116, 7
    %v118 = vsub.s32 0, %v117
    %v119 = vrot.slane %v21, %v118
    %v120 = vlaneseq
    %v121 = vshrl.u32 %v120, 7
    %v122 = vsub.s32 0, %v121
    %v123 = vrot.slane %v22, %v122
    %v124 = vlaneseq
    %v125 = vshrl.u32 %v124, 7
    %v126 = vsub.s32 0, %v125
    %v127 = vrot.slane %v23, %v126
    %v128 = vlaneseq
    %v129 = vshrl.u32 %v128, 7
    %v130 = vsub.s32 0, %v129
    %v131 = vrot.slane %v24, %v130
    %v132 = vmul.f32 %v115, %v119
    %v133 = vmul.f32 %v114, %v123
    %v134 = vmul.f32 %v113, %v127
    %v135 = vmul.f32 %v112, %v131
    %136 = vrot.lane.b32.xlu0 %v93, 16
    %v137 = vpop.permute.xlu0 %136
    %138 = vrot.lane.b32.xlu0 %v94, 16
    %v139 = vpop.permute.xlu0 %138
    %140 = vrot.lane.b32.xlu0 %v95, 16
    %v141 = vpop.permute.xlu0 %140
    %142 = vrot.lane.b32.xlu0 %v96, 16
    %v143 = vpop.permute.xlu0 %142
    %vm144 = vcmp.lt.s32.totalorder %v110, 16
    %v145 = vsel %vm144, %v141, %v143
    %v146 = vsel %vm144, %v139, %v141
    %v147 = vsel %vm144, %v137, %v139
    %v148 = vsel %vm144, %v143, %v137
    %v149 = vlaneseq
    %v150 = vshrl.u32 %v149, 7
    %v151 = vsub.s32 1, %v150
    %v152 = vrot.slane %v21, %v151
    %v153 = vlaneseq
    %v154 = vshrl.u32 %v153, 7
    %v155 = vsub.s32 1, %v154
    %v156 = vrot.slane %v22, %v155
    %v157 = vlaneseq
    %v158 = vshrl.u32 %v157, 7
    %v159 = vsub.s32 1, %v158
    %v160 = vrot.slane %v23, %v159
    %v161 = vlaneseq
    %v162 = vshrl.u32 %v161, 7
    %v163 = vsub.s32 1, %v162
    %v164 = vrot.slane %v24, %v163
    %v165 = vmul.f32 %v148, %v152
    %v166 = vmul.f32 %v147, %v156
    %v167 = vmul.f32 %v146, %v160
    %v168 = vmul.f32 %v145, %v164
    %169 = vrot.lane.b32.xlu0 %v93, 15
    %v170 = vpop.permute.xlu0 %169
    %171 = vrot.lane.b32.xlu0 %v94, 15
    %v172 = vpop.permute.xlu0 %171
    %173 = vrot.lane.b32.xlu0 %v95, 15
    %v174 = vpop.permute.xlu0 %173
    %175 = vrot.lane.b32.xlu0 %v96, 15
    %v176 = vpop.permute.xlu0 %175
    %vm177 = vcmp.lt.s32.totalorder %v110, 15
    %v178 = vsel %vm177, %v174, %v176
    %v179 = vsel %vm177, %v172, %v174
    %v180 = vsel %vm177, %v170, %v172
    %v181 = vsel %vm177, %v176, %v170
    %v182 = vlaneseq
    %v183 = vshrl.u32 %v182, 7
    %v184 = vsub.s32 2, %v183
    %v185 = vrot.slane %v21, %v184
    %v186 = vlaneseq
    %v187 = vshrl.u32 %v186, 7
    %v188 = vsub.s32 2, %v187
    %v189 = vrot.slane %v22, %v188
    %v190 = vlaneseq
    %v191 = vshrl.u32 %v190, 7
    %v192 = vsub.s32 2, %v191
    %v193 = vrot.slane %v23, %v192
    %v194 = vlaneseq
    %v195 = vshrl.u32 %v194, 7
    %v196 = vsub.s32 2, %v195
    %v197 = vrot.slane %v24, %v196
    %v198 = vmul.f32 %v181, %v185
    %v199 = vmul.f32 %v180, %v189
    %v200 = vmul.f32 %v179, %v193
    %v201 = vmul.f32 %v178, %v197
    %202 = vrot.lane.b32.xlu0 %v93, 1
    %v203 = vpop.permute.xlu0 %202
    %204 = vrot.lane.b32.xlu0 %v94, 1
    %v205 = vpop.permute.xlu0 %204
    %206 = vrot.lane.b32.xlu0 %v95, 1
    %v207 = vpop.permute.xlu0 %206
    %208 = vrot.lane.b32.xlu0 %v96, 1
    %v209 = vpop.permute.xlu0 %208
    %vm210 = vcmp.lt.s32.totalorder %v110, 1
    %v211 = vsel %vm210, %v207, %v209
    %v212 = vsel %vm210, %v205, %v207
    %v213 = vsel %vm210, %v203, %v205
    %v214 = vsel %vm210, %v209, %v203
    %v215 = vlaneseq
    %v216 = vshrl.u32 %v215, 7
    %v217 = vsub.s32 3, %v216
    %v218 = vrot.slane %v21, %v217
    %v219 = vlaneseq
    %v220 = vshrl.u32 %v219, 7
    %v221 = vsub.s32 3, %v220
    %v222 = vrot.slane %v22, %v221
    %v223 = vlaneseq
    %v224 = vshrl.u32 %v223, 7
    %v225 = vsub.s32 3, %v224
    %v226 = vrot.slane %v23, %v225
    %v227 = vlaneseq
    %v228 = vshrl.u32 %v227, 7
    %v229 = vsub.s32 3, %v228
    %v230 = vrot.slane %v24, %v229
    %v231 = vmul.f32 %v214, %v218
    %v232 = vmul.f32 %v213, %v222
    %v233 = vmul.f32 %v212, %v226
    %v234 = vmul.f32 %v211, %v230
    %235 = vrot.lane.b32.xlu0 %v93, 127
    %v236 = vpop.permute.xlu0 %235
    %237 = vrot.lane.b32.xlu0 %v94, 127
    %v238 = vpop.permute.xlu0 %237
    %239 = vrot.lane.b32.xlu0 %v95, 127
    %v240 = vpop.permute.xlu0 %239
    %241 = vrot.lane.b32.xlu0 %v96, 127
    %v242 = vpop.permute.xlu0 %241
    %vm243 = vcmp.lt.s32.totalorder %v110, 127
    %v244 = vsel %vm243, %v240, %v242
    %v245 = vsel %vm243, %v238, %v240
    %v246 = vsel %vm243, %v236, %v238
    %v247 = vsel %vm243, %v242, %v236
    %v248 = vlaneseq
    %v249 = vshrl.u32 %v248, 7
    %v250 = vsub.s32 4, %v249
    %v251 = vrot.slane %v21, %v250
    %v252 = vlaneseq
    %v253 = vshrl.u32 %v252, 7
    %v254 = vsub.s32 4, %v253
    %v255 = vrot.slane %v22, %v254
    %v256 = vlaneseq
    %v257 = vshrl.u32 %v256, 7
    %v258 = vsub.s32 4, %v257
    %v259 = vrot.slane %v23, %v258
    %v260 = vlaneseq
    %v261 = vshrl.u32 %v260, 7
    %v262 = vsub.s32 4, %v261
    %v263 = vrot.slane %v24, %v262
    %v264 = vmul.f32 %v246, %v251
    %v265 = vmul.f32 %v245, %v255
    %v266 = vmul.f32 %v244, %v259
    %v267 = vmul.f32 %v247, %v263
    %268 = vrot.lane.b32.xlu0 %v93, 113
    %v269 = vpop.permute.xlu0 %268
    %270 = vrot.lane.b32.xlu0 %v94, 113
    %v271 = vpop.permute.xlu0 %270
    %272 = vrot.lane.b32.xlu0 %v95, 113
    %v273 = vpop.permute.xlu0 %272
    %274 = vrot.lane.b32.xlu0 %v96, 113
    %v275 = vpop.permute.xlu0 %274
    %vm276 = vcmp.lt.s32.totalorder %v110, 113
    %v277 = vsel %vm276, %v273, %v275
    %v278 = vsel %vm276, %v271, %v273
    %v279 = vsel %vm276, %v269, %v271
    %v280 = vsel %vm276, %v275, %v269
    %v281 = vlaneseq
    %v282 = vshrl.u32 %v281, 7
    %v283 = vsub.s32 5, %v282
    %v284 = vrot.slane %v21, %v283
    %v285 = vlaneseq
    %v286 = vshrl.u32 %v285, 7
    %v287 = vsub.s32 5, %v286
    %v288 = vrot.slane %v22, %v287
    %v289 = vlaneseq
    %v290 = vshrl.u32 %v289, 7
    %v291 = vsub.s32 5, %v290
    %v292 = vrot.slane %v23, %v291
    %v293 = vlaneseq
    %v294 = vshrl.u32 %v293, 7
    %v295 = vsub.s32 5, %v294
    %v296 = vrot.slane %v24, %v295
    %v297 = vmul.f32 %v279, %v284
    %v298 = vmul.f32 %v278, %v288
    %v299 = vmul.f32 %v277, %v292
    %v300 = vmul.f32 %v280, %v296
    %301 = vrot.lane.b32.xlu0 %v93, 112
    %v302 = vpop.permute.xlu0 %301
    %303 = vrot.lane.b32.xlu0 %v94, 112
    %v304 = vpop.permute.xlu0 %303
    %305 = vrot.lane.b32.xlu0 %v95, 112
    %v306 = vpop.permute.xlu0 %305
    %307 = vrot.lane.b32.xlu0 %v96, 112
    %v308 = vpop.permute.xlu0 %307
    %vm309 = vcmp.lt.s32.totalorder %v110, 112
    %v310 = vsel %vm309, %v306, %v308
    %v311 = vsel %vm309, %v304, %v306
    %v312 = vsel %vm309, %v302, %v304
    %v313 = vsel %vm309, %v308, %v302
    %v314 = vlaneseq
    %v315 = vshrl.u32 %v314, 7
    %v316 = vsub.s32 6, %v315
    %v317 = vrot.slane %v21, %v316
    %v318 = vlaneseq
    %v319 = vshrl.u32 %v318, 7
    %v320 = vsub.s32 6, %v319
    %v321 = vrot.slane %v22, %v320
    %v322 = vlaneseq
    %v323 = vshrl.u32 %v322, 7
    %v324 = vsub.s32 6, %v323
    %v325 = vrot.slane %v23, %v324
    %v326 = vlaneseq
    %v327 = vshrl.u32 %v326, 7
    %v328 = vsub.s32 6, %v327
    %v329 = vrot.slane %v24, %v328
    %v330 = vmul.f32 %v312, %v317
    %v331 = vmul.f32 %v311, %v321
    %v332 = vmul.f32 %v310, %v325
    %v333 = vmul.f32 %v313, %v329
    %334 = vrot.lane.b32.xlu0 %v93, 111
    %v335 = vpop.permute.xlu0 %334
    %336 = vrot.lane.b32.xlu0 %v94, 111
    %v337 = vpop.permute.xlu0 %336
    %338 = vrot.lane.b32.xlu0 %v95, 111
    %v339 = vpop.permute.xlu0 %338
    %340 = vrot.lane.b32.xlu0 %v96, 111
    %v341 = vpop.permute.xlu0 %340
    %vm342 = vcmp.lt.s32.totalorder %v110, 111
    %v343 = vsel %vm342, %v339, %v341
    %v344 = vsel %vm342, %v337, %v339
    %v345 = vsel %vm342, %v335, %v337
    %v346 = vsel %vm342, %v341, %v335
    %v347 = vlaneseq
    %v348 = vshrl.u32 %v347, 7
    %v349 = vsub.s32 7, %v348
    %v350 = vrot.slane %v21, %v349
    %v351 = vlaneseq
    %v352 = vshrl.u32 %v351, 7
    %v353 = vsub.s32 7, %v352
    %v354 = vrot.slane %v22, %v353
    %v355 = vlaneseq
    %v356 = vshrl.u32 %v355, 7
    %v357 = vsub.s32 7, %v356
    %v358 = vrot.slane %v23, %v357
    %v359 = vlaneseq
    %v360 = vshrl.u32 %v359, 7
    %v361 = vsub.s32 7, %v360
    %v362 = vrot.slane %v24, %v361
    %v363 = vmul.f32 %v345, %v350
    %v364 = vmul.f32 %v344, %v354
    %v365 = vmul.f32 %v343, %v358
    %v366 = vmul.f32 %v346, %v362
    %367 = vrot.lane.b32.xlu0 %v97, 17
    %v368 = vpop.permute.xlu0 %367
    %369 = vrot.lane.b32.xlu0 %v98, 17
    %v370 = vpop.permute.xlu0 %369
    %371 = vrot.lane.b32.xlu0 %v99, 17
    %v372 = vpop.permute.xlu0 %371
    %373 = vrot.lane.b32.xlu0 %v100, 17
    %v374 = vpop.permute.xlu0 %373
    %v375 = vsel %vm111, %v372, %v374
    %v376 = vsel %vm111, %v370, %v372
    %v377 = vsel %vm111, %v368, %v370
    %v378 = vsel %vm111, %v374, %v368
    %v379 = vmul.f32 %v378, %v119
    %v380 = vmul.f32 %v377, %v123
    %v381 = vmul.f32 %v376, %v127
    %v382 = vmul.f32 %v375, %v131
    %383 = vrot.lane.b32.xlu0 %v97, 16
    %v384 = vpop.permute.xlu0 %383
    %385 = vrot.lane.b32.xlu0 %v98, 16
    %v386 = vpop.permute.xlu0 %385
    %387 = vrot.lane.b32.xlu0 %v99, 16
    %v388 = vpop.permute.xlu0 %387
    %389 = vrot.lane.b32.xlu0 %v100, 16
    %v390 = vpop.permute.xlu0 %389
    %v391 = vsel %vm144, %v388, %v390
    %v392 = vsel %vm144, %v386, %v388
    %v393 = vsel %vm144, %v384, %v386
    %v394 = vsel %vm144, %v390, %v384
    %v395 = vmul.f32 %v394, %v152
    %v396 = vmul.f32 %v393, %v156
    %v397 = vmul.f32 %v392, %v160
    %v398 = vmul.f32 %v391, %v164
    %399 = vrot.lane.b32.xlu0 %v97, 15
    %v400 = vpop.permute.xlu0 %399
    %401 = vrot.lane.b32.xlu0 %v98, 15
    %v402 = vpop.permute.xlu0 %401
    %403 = vrot.lane.b32.xlu0 %v99, 15
    %v404 = vpop.permute.xlu0 %403
    %405 = vrot.lane.b32.xlu0 %v100, 15
    %v406 = vpop.permute.xlu0 %405
    %v407 = vsel %vm177, %v404, %v406
    %v408 = vsel %vm177, %v402, %v404
    %v409 = vsel %vm177, %v400, %v402
    %v410 = vsel %vm177, %v406, %v400
    %v411 = vmul.f32 %v410, %v185
    %v412 = vmul.f32 %v409, %v189
    %v413 = vmul.f32 %v408, %v193
    %v414 = vmul.f32 %v407, %v197
    %415 = vrot.lane.b32.xlu0 %v97, 1
    %v416 = vpop.permute.xlu0 %415
    %417 = vrot.lane.b32.xlu0 %v98, 1
    %v418 = vpop.permute.xlu0 %417
    %419 = vrot.lane.b32.xlu0 %v99, 1
    %v420 = vpop.permute.xlu0 %419
    %421 = vrot.lane.b32.xlu0 %v100, 1
    %v422 = vpop.permute.xlu0 %421
    %v423 = vsel %vm210, %v420, %v422
    %v424 = vsel %vm210, %v418, %v420
    %v425 = vsel %vm210, %v416, %v418
    %v426 = vsel %vm210, %v422, %v416
    %v427 = vmul.f32 %v426, %v218
    %v428 = vmul.f32 %v425, %v222
    %v429 = vmul.f32 %v424, %v226
    %v430 = vmul.f32 %v423, %v230
    %431 = vrot.lane.b32.xlu0 %v97, 127
    %v432 = vpop.permute.xlu0 %431
    %433 = vrot.lane.b32.xlu0 %v98, 127
    %v434 = vpop.permute.xlu0 %433
    %435 = vrot.lane.b32.xlu0 %v99, 127
    %v436 = vpop.permute.xlu0 %435
    %437 = vrot.lane.b32.xlu0 %v100, 127
    %v438 = vpop.permute.xlu0 %437
    %v439 = vsel %vm243, %v436, %v438
    %v440 = vsel %vm243, %v434, %v436
    %v441 = vsel %vm243, %v432, %v434
    %v442 = vsel %vm243, %v438, %v432
    %v443 = vmul.f32 %v441, %v251
    %v444 = vmul.f32 %v440, %v255
    %v445 = vmul.f32 %v439, %v259
    %v446 = vmul.f32 %v442, %v263
    %447 = vrot.lane.b32.xlu0 %v97, 113
    %v448 = vpop.permute.xlu0 %447
    %449 = vrot.lane.b32.xlu0 %v98, 113
    %v450 = vpop.permute.xlu0 %449
    %451 = vrot.lane.b32.xlu0 %v99, 113
    %v452 = vpop.permute.xlu0 %451
    %453 = vrot.lane.b32.xlu0 %v100, 113
    %v454 = vpop.permute.xlu0 %453
    %v455 = vsel %vm276, %v452, %v454
    %v456 = vsel %vm276, %v450, %v452
    %v457 = vsel %vm276, %v448, %v450
    %v458 = vsel %vm276, %v454, %v448
    %v459 = vmul.f32 %v457, %v284
    %v460 = vmul.f32 %v456, %v288
    %v461 = vmul.f32 %v455, %v292
    %v462 = vmul.f32 %v458, %v296
    %463 = vrot.lane.b32.xlu0 %v97, 112
    %v464 = vpop.permute.xlu0 %463
    %465 = vrot.lane.b32.xlu0 %v98, 112
    %v466 = vpop.permute.xlu0 %465
    %467 = vrot.lane.b32.xlu0 %v99, 112
    %v468 = vpop.permute.xlu0 %467
    %469 = vrot.lane.b32.xlu0 %v100, 112
    %v470 = vpop.permute.xlu0 %469
    %v471 = vsel %vm309, %v468, %v470
    %v472 = vsel %vm309, %v466, %v468
    %v473 = vsel %vm309, %v464, %v466
    %v474 = vsel %vm309, %v470, %v464
    %v475 = vmul.f32 %v473, %v317
    %v476 = vmul.f32 %v472, %v321
    %v477 = vmul.f32 %v471, %v325
    %v478 = vmul.f32 %v474, %v329
    %479 = vrot.lane.b32.xlu0 %v97, 111
    %v480 = vpop.permute.xlu0 %479
    %481 = vrot.lane.b32.xlu0 %v98, 111
    %v482 = vpop.permute.xlu0 %481
    %483 = vrot.lane.b32.xlu0 %v99, 111
    %v484 = vpop.permute.xlu0 %483
    %485 = vrot.lane.b32.xlu0 %v100, 111
    %v486 = vpop.permute.xlu0 %485
    %v487 = vsel %vm342, %v484, %v486
    %v488 = vsel %vm342, %v482, %v484
    %v489 = vsel %vm342, %v480, %v482
    %v490 = vsel %vm342, %v486, %v480
    %v491 = vmul.f32 %v489, %v350
    %v492 = vmul.f32 %v488, %v354
    %v493 = vmul.f32 %v487, %v358
    %v494 = vmul.f32 %v490, %v362
    %v495 = vld [vmem:[%s4] sm:$0xff]
    %v496 = vld [vmem:[%s4 + $0x8] sm:$0xff]
    %v497 = vld [vmem:[%s4 + $0x48] sm:$0xff]
    %v498 = vld [vmem:[%s4 + $0x50] sm:$0xff]
    %v499 = vld [vmem:[%s4 + $0x40] sm:$0xff]
    %v500 = vld [vmem:[%s4 + $0x88] sm:$0xff]
    %502 = vset.pattern.permute.xlu0 0
    %503 = vperm.xlu0 %502, %v499
    %v504 = vpop.permute.xlu0 %503
    %507 = vset.pattern.permute.xlu0 0
    %508 = vperm.xlu0 %507, %v500
    %v509 = vpop.permute.xlu0 %508
    %vm511 = vcmask 130048
    %v513 = vsel %vm511, %v496, 0
    %v516 = vsel %vm511, %v498, 0
    %518 = vmatprep.subr.mxu0 %v133
    %519 = vmatpush1.msra.mxu0 %v132
    %520 = vmatprep.subr.mxu0 %v166
    %521 = vmatpush1.msra.mxu0 %v165
    %522 = vmatprep.subr.mxu0 %v199
    %523 = vmatpush1.msra.mxu0 %v198
    %524 = vmatprep.subr.mxu0 %v232
    %525 = vmatpush1.msra.mxu0 %v231
    %526 = vmatprep.subr.mxu0 %v94
    %527 = vmatpush1.msra.mxu0 %v93
    %528 = vmatprep.subr.mxu0 %v265
    %529 = vmatpush1.msra.mxu0 %v264
    %530 = vmatprep.subr.mxu0 %v298
    %531 = vmatpush1.msra.mxu0 %v297
    %532 = vmatprep.subr.mxu0 %v331
    %533 = vmatpush1.msra.mxu0 %v330
    %534 = vmatprep.subr.mxu0 %v364
    %535 = vmatpush1.msra.mxu0 %v363
    %536 = vmatprep.subr.mxu0 %v380
    %537 = vmatpush1.msra.mxu0 %v379
    %538 = vmatprep.subr.mxu0 %v396
    %539 = vmatpush1.msra.mxu0 %v395
    %540 = vmatprep.subr.mxu0 %v412
    %541 = vmatpush1.msra.mxu0 %v411
    %542 = vmatprep.subr.mxu0 %v428
    %543 = vmatpush1.msra.mxu0 %v427
    %544 = vmatprep.subr.mxu0 %v98
    %545 = vmatpush1.msra.mxu0 %v97
    %546 = vmatprep.subr.mxu0 %v444
    %547 = vmatpush1.msra.mxu0 %v443
    %548 = vmatprep.subr.mxu0 %v460
    %549 = vmatpush1.msra.mxu0 %v459
    %550 = vmatprep.subr.mxu0 %v476
    %551 = vmatpush1.msra.mxu0 %v475
    %552 = vmatprep.subr.mxu0 %v492
    %553 = vmatpush1.msra.mxu0 %v491
    %554 = vmatprep.subr.mxu0 0.0
    %555 = vmatpush1.msra.mxu0 0.0
    %556 = vmatprep.subr.mxu0 0.0
    %557 = vmatpush1.msra.mxu0 0.0
    %558 = vmatprep.subr.mxu0 0.0
    %559 = vmatpush1.msra.mxu0 0.0
    %560 = vmatprep.subr.mxu0 0.0
    %561 = vmatpush1.msra.mxu0 0.0
    %562 = vmatprep.subr.mxu0 0.0
    %563 = vmatpush1.msra.mxu0 0.0
    %564 = vmatprep.subr.mxu0 0.0
    %565 = vmatpush1.msra.mxu0 0.0
    %566 = vmatprep.subr.mxu0 0.0
    %567 = vmatpush1.msra.mxu0 0.0
    %568 = vmatprep.subr.mxu0 0.0
    %569 = vmatpush1.msra.mxu0 0.0
    %570 = vmatprep.subr.mxu0 0.0
    %571 = vmatpush1.msra.mxu0 0.0
    %572 = vmatprep.subr.mxu0 0.0
    %573 = vmatpush1.msra.mxu0 0.0
    %574 = vmatprep.subr.mxu0 0.0
    %575 = vmatpush1.msra.mxu0 0.0
    %576 = vmatprep.subr.mxu0 0.0
    %577 = vmatpush1.msra.mxu0 0.0
    %578 = vmatprep.subr.mxu0 0.0
    %579 = vmatpush1.msra.mxu0 0.0
    %580 = vmatprep.subr.mxu0 0.0
    %581 = vmatpush1.msra.mxu0 0.0
    %582 = vmatprep.mubr.f32.mxu0 %v513
    %583 = vmatmul.mubr.f32.gmra.mrb[0].mxu0 %v495
    %v584 = vpop.f32.mrb[0].mxu0
    %v585 = vadd.f32 %v504, %v584
    %v586 = vpop.f32.mrb[0].mxu0
    %v587 = vadd.f32 %v504, %v586
    %588 = vmatprep.mubr.f32.mxu0 %v516
    %589 = vmatmul.mubr.f32.gmra.mrb[0].mxu0 %v497
    %v590 = vpop.f32.mrb[0].mxu0
    %v591 = vadd.f32 %v509, %v590
    %v592 = vpop.f32.mrb[0].mxu0
    %v593 = vadd.f32 %v509, %v592
    %594 = vdwg.mxu0
    %595 = vmatprep.subr.mxu0 %v135
    %596 = vmatpush1.msra.mxu0 %v134
    %597 = vmatprep.subr.mxu0 %v168
    %598 = vmatpush1.msra.mxu0 %v167
    %599 = vmatprep.subr.mxu0 %v201
    %600 = vmatpush1.msra.mxu0 %v200
    %601 = vmatprep.subr.mxu0 %v234
    %602 = vmatpush1.msra.mxu0 %v233
    %603 = vmatprep.subr.mxu0 %v96
    %604 = vmatpush1.msra.mxu0 %v95
    %605 = vmatprep.subr.mxu0 %v267
    %606 = vmatpush1.msra.mxu0 %v266
    %607 = vmatprep.subr.mxu0 %v300
    %608 = vmatpush1.msra.mxu0 %v299
    %609 = vmatprep.subr.mxu0 %v333
    %610 = vmatpush1.msra.mxu0 %v332
    %611 = vmatprep.subr.mxu0 %v366
    %612 = vmatpush1.msra.mxu0 %v365
    %613 = vmatprep.subr.mxu0 %v382
    %614 = vmatpush1.msra.mxu0 %v381
    %615 = vmatprep.subr.mxu0 %v398
    %616 = vmatpush1.msra.mxu0 %v397
    %617 = vmatprep.subr.mxu0 %v414
    %618 = vmatpush1.msra.mxu0 %v413
    %619 = vmatprep.subr.mxu0 %v430
    %620 = vmatpush1.msra.mxu0 %v429
    %621 = vmatprep.subr.mxu0 %v100
    %622 = vmatpush1.msra.mxu0 %v99
    %623 = vmatprep.subr.mxu0 %v446
    %624 = vmatpush1.msra.mxu0 %v445
    %625 = vmatprep.subr.mxu0 %v462
    %626 = vmatpush1.msra.mxu0 %v461
    %627 = vmatprep.subr.mxu0 %v478
    %628 = vmatpush1.msra.mxu0 %v477
    %629 = vmatprep.subr.mxu0 %v494
    %630 = vmatpush1.msra.mxu0 %v493
    %631 = vmatprep.subr.mxu0 0.0
    %632 = vmatpush1.msra.mxu0 0.0
    %633 = vmatprep.subr.mxu0 0.0
    %634 = vmatpush1.msra.mxu0 0.0
    %635 = vmatprep.subr.mxu0 0.0
    %636 = vmatpush1.msra.mxu0 0.0
    %637 = vmatprep.subr.mxu0 0.0
    %638 = vmatpush1.msra.mxu0 0.0
    %639 = vmatprep.subr.mxu0 0.0
    %640 = vmatpush1.msra.mxu0 0.0
    %641 = vmatprep.subr.mxu0 0.0
    %642 = vmatpush1.msra.mxu0 0.0
    %643 = vmatprep.subr.mxu0 0.0
    %644 = vmatpush1.msra.mxu0 0.0
    %645 = vmatprep.subr.mxu0 0.0
    %646 = vmatpush1.msra.mxu0 0.0
    %647 = vmatprep.subr.mxu0 0.0
    %648 = vmatpush1.msra.mxu0 0.0
    %649 = vmatprep.subr.mxu0 0.0
    %650 = vmatpush1.msra.mxu0 0.0
    %651 = vmatprep.subr.mxu0 0.0
    %652 = vmatpush1.msra.mxu0 0.0
    %653 = vmatprep.subr.mxu0 0.0
    %654 = vmatpush1.msra.mxu0 0.0
    %655 = vmatprep.subr.mxu0 0.0
    %656 = vmatpush1.msra.mxu0 0.0
    %657 = vmatprep.subr.mxu0 0.0
    %658 = vmatpush1.msra.mxu0 0.0
    %659 = vmatprep.mubr.f32.mxu0 %v513
    %660 = vmatmul.mubr.f32.gmra.mrb[0].mxu0 %v495
    %v661 = vpop.f32.mrb[0].mxu0
    %v662 = vadd.f32 %v504, %v661
    %v663 = vpop.f32.mrb[0].mxu0
    %v664 = vadd.f32 %v504, %v663
    %665 = vmatprep.mubr.f32.mxu0 %v516
    %666 = vmatmul.mubr.f32.gmra.mrb[0].mxu0 %v497
    %v667 = vpop.f32.mrb[0].mxu0
    %v668 = vadd.f32 %v509, %v667
    %v669 = vpop.f32.mrb[0].mxu0
    %v670 = vadd.f32 %v509, %v669
    %671 = vdwg.mxu0
    %v672 = vmax.f32 %v585, 0.0
    %v673 = vmax.f32 %v587, 0.0
    %v674 = vmax.f32 %v662, 0.0
    %v675 = vmax.f32 %v664, 0.0
    %v676 = vmax.f32 %v591, 0.0
    %v677 = vmax.f32 %v593, 0.0
    %v678 = vmax.f32 %v668, 0.0
    %v679 = vmax.f32 %v670, 0.0
    %v680 = vld [vmem:[%s4 + $0x18] sm:$0xff]
    %v681 = vld [vmem:[%s4 + $0x40] sm:$0xff]
    %683 = vset.pattern.permute.xlu0 1
    %684 = vperm.xlu0 %683, %v681
    %v685 = vpop.permute.xlu0 %684
    %v688 = vsel %vm511, %v680, 0
    %690 = vmatprep.subr.mxu0 %v673
    %691 = vmatpush1.msra.mxu0 %v672
    %692 = vmatprep.subr.mxu0 %v677
    %693 = vmatpush1.msra.mxu0 %v676
    %694 = vmatprep.subr.mxu0 0.0
    %695 = vmatpush1.msra.mxu0 0.0
    %696 = vmatprep.subr.mxu0 0.0
    %697 = vmatpush1.msra.mxu0 0.0
    %698 = vmatprep.subr.mxu0 0.0
    %699 = vmatpush1.msra.mxu0 0.0
    %700 = vmatprep.subr.mxu0 0.0
    %701 = vmatpush1.msra.mxu0 0.0
    %702 = vmatprep.subr.mxu0 0.0
    %703 = vmatpush1.msra.mxu0 0.0
    %704 = vmatprep.subr.mxu0 0.0
    %705 = vmatpush1.msra.mxu0 0.0
    %706 = vmatprep.subr.mxu0 0.0
    %707 = vmatpush1.msra.mxu0 0.0
    %708 = vmatprep.subr.mxu0 0.0
    %709 = vmatpush1.msra.mxu0 0.0
    %710 = vmatprep.subr.mxu0 0.0
    %711 = vmatpush1.msra.mxu0 0.0
    %712 = vmatprep.subr.mxu0 0.0
    %713 = vmatpush1.msra.mxu0 0.0
    %714 = vmatprep.subr.mxu0 0.0
    %715 = vmatpush1.msra.mxu0 0.0
    %716 = vmatprep.subr.mxu0 0.0
    %717 = vmatpush1.msra.mxu0 0.0
    %718 = vmatprep.subr.mxu0 0.0
    %719 = vmatpush1.msra.mxu0 0.0
    %720 = vmatprep.subr.mxu0 0.0
    %721 = vmatpush1.msra.mxu0 0.0
    %722 = vmatprep.subr.mxu0 0.0
    %723 = vmatpush1.msra.mxu0 0.0
    %724 = vmatprep.subr.mxu0 0.0
    %725 = vmatpush1.msra.mxu0 0.0
    %726 = vmatprep.subr.mxu0 0.0
    %727 = vmatpush1.msra.mxu0 0.0
    %728 = vmatprep.subr.mxu0 0.0
    %729 = vmatpush1.msra.mxu0 0.0
    %730 = vmatprep.subr.mxu0 0.0
    %731 = vmatpush1.msra.mxu0 0.0
    %732 = vmatprep.subr.mxu0 0.0
    %733 = vmatpush1.msra.mxu0 0.0
    %734 = vmatprep.subr.mxu0 0.0
    %735 = vmatpush1.msra.mxu0 0.0
    %736 = vmatprep.subr.mxu0 0.0
    %737 = vmatpush1.msra.mxu0 0.0
    %738 = vmatprep.subr.mxu0 0.0
    %739 = vmatpush1.msra.mxu0 0.0
    %740 = vmatprep.subr.mxu0 0.0
    %741 = vmatpush1.msra.mxu0 0.0
    %742 = vmatprep.subr.mxu0 0.0
    %743 = vmatpush1.msra.mxu0 0.0
    %744 = vmatprep.subr.mxu0 0.0
    %745 = vmatpush1.msra.mxu0 0.0
    %746 = vmatprep.subr.mxu0 0.0
    %747 = vmatpush1.msra.mxu0 0.0
    %748 = vmatprep.subr.mxu0 0.0
    %749 = vmatpush1.msra.mxu0 0.0
    %750 = vmatprep.subr.mxu0 0.0
    %751 = vmatpush1.msra.mxu0 0.0
    %752 = vmatprep.subr.mxu0 0.0
    %753 = vmatpush1.msra.mxu0 0.0
    %754 = vmatprep.mubr.f32.mxu0 0.0
    %755 = vmatmul.mubr.f32.gmra.mrb[0].mxu0 %v688
    %v756 = vpop.f32.mrb[0].mxu0
    %v757 = vadd.f32 %v685, %v756
    %v758 = vpop.f32.mrb[0].mxu0
    %v759 = vadd.f32 %v685, %v758
    %760 = vdwg.mxu0
    %761 = vmatprep.subr.mxu0 %v675
    %762 = vmatpush1.msra.mxu0 %v674
    %763 = vmatprep.subr.mxu0 %v679
    %764 = vmatpush1.msra.mxu0 %v678
    %765 = vmatprep.subr.mxu0 0.0
    %766 = vmatpush1.msra.mxu0 0.0
    %767 = vmatprep.subr.mxu0 0.0
    %768 = vmatpush1.msra.mxu0 0.0
    %769 = vmatprep.subr.mxu0 0.0
    %770 = vmatpush1.msra.mxu0 0.0
    %771 = vmatprep.subr.mxu0 0.0
    %772 = vmatpush1.msra.mxu0 0.0
    %773 = vmatprep.subr.mxu0 0.0
    %774 = vmatpush1.msra.mxu0 0.0
    %775 = vmatprep.subr.mxu0 0.0
    %776 = vmatpush1.msra.mxu0 0.0
    %777 = vmatprep.subr.mxu0 0.0
    %778 = vmatpush1.msra.mxu0 0.0
    %779 = vmatprep.subr.mxu0 0.0
    %780 = vmatpush1.msra.mxu0 0.0
    %781 = vmatprep.subr.mxu0 0.0
    %782 = vmatpush1.msra.mxu0 0.0
    %783 = vmatprep.subr.mxu0 0.0
    %784 = vmatpush1.msra.mxu0 0.0
    %785 = vmatprep.subr.mxu0 0.0
    %786 = vmatpush1.msra.mxu0 0.0
    %787 = vmatprep.subr.mxu0 0.0
    %788 = vmatpush1.msra.mxu0 0.0
    %789 = vmatprep.subr.mxu0 0.0
    %790 = vmatpush1.msra.mxu0 0.0
    %791 = vmatprep.subr.mxu0 0.0
    %792 = vmatpush1.msra.mxu0 0.0
    %793 = vmatprep.subr.mxu0 0.0
    %794 = vmatpush1.msra.mxu0 0.0
    %795 = vmatprep.subr.mxu0 0.0
    %796 = vmatpush1.msra.mxu0 0.0
    %797 = vmatprep.subr.mxu0 0.0
    %798 = vmatpush1.msra.mxu0 0.0
    %799 = vmatprep.subr.mxu0 0.0
    %800 = vmatpush1.msra.mxu0 0.0
    %801 = vmatprep.subr.mxu0 0.0
    %802 = vmatpush1.msra.mxu0 0.0
    %803 = vmatprep.subr.mxu0 0.0
    %804 = vmatpush1.msra.mxu0 0.0
    %805 = vmatprep.subr.mxu0 0.0
    %806 = vmatpush1.msra.mxu0 0.0
    %807 = vmatprep.subr.mxu0 0.0
    %808 = vmatpush1.msra.mxu0 0.0
    %809 = vmatprep.subr.mxu0 0.0
    %810 = vmatpush1.msra.mxu0 0.0
    %811 = vmatprep.subr.mxu0 0.0
    %812 = vmatpush1.msra.mxu0 0.0
    %813 = vmatprep.subr.mxu0 0.0
    %814 = vmatpush1.msra.mxu0 0.0
    %815 = vmatprep.subr.mxu0 0.0
    %816 = vmatpush1.msra.mxu0 0.0
    %817 = vmatprep.subr.mxu0 0.0
    %818 = vmatpush1.msra.mxu0 0.0
    %819 = vmatprep.subr.mxu0 0.0
    %820 = vmatpush1.msra.mxu0 0.0
    %821 = vmatprep.subr.mxu0 0.0
    %822 = vmatpush1.msra.mxu0 0.0
    %823 = vmatprep.subr.mxu0 0.0
    %824 = vmatpush1.msra.mxu0 0.0
    %825 = vmatprep.mubr.f32.mxu0 0.0
    %826 = vmatmul.mubr.f32.gmra.mrb[0].mxu0 %v688
    %v827 = vpop.f32.mrb[0].mxu0
    %v828 = vadd.f32 %v685, %v827
    %v829 = vpop.f32.mrb[0].mxu0
    %v830 = vadd.f32 %v685, %v829
    %831 = vdwg.mxu0
    %v832 = vmax.f32 %v757, 0.0
    %v833 = vmax.f32 %v759, 0.0
    %v834 = vmax.f32 %v828, 0.0
    %v835 = vmax.f32 %v830, 0.0
    %836 = vmatprep.subr.mxu0 0.0
    %837 = vmatpush1.msra.mxu0 %v29
    %838 = vmatprep.subr.mxu0 0.0
    %839 = vmatpush1.msra.mxu0 %v30
    %840 = vmatprep.subr.mxu0 0.0
    %841 = vmatpush1.msra.mxu0 %v31
    %842 = vmatprep.subr.mxu0 0.0
    %843 = vmatpush1.msra.mxu0 %v32
    %844 = vmatprep.subr.mxu0 0.0
    %845 = vmatpush1.msra.mxu0 %v33
    %846 = vmatprep.subr.mxu0 0.0
    %847 = vmatpush1.msra.mxu0 %v34
    %848 = vmatprep.subr.mxu0 0.0
    %849 = vmatpush1.msra.mxu0 %v35
    %850 = vmatprep.subr.mxu0 0.0
    %851 = vmatpush1.msra.mxu0 %v36
    %852 = vmatprep.subr.mxu0 0.0
    %853 = vmatpush1.msra.mxu0 %v37
    %854 = vmatprep.subr.mxu0 0.0
    %855 = vmatpush1.msra.mxu0 %v38
    %856 = vmatprep.subr.mxu0 0.0
    %857 = vmatpush1.msra.mxu0 %v39
    %858 = vmatprep.subr.mxu0 0.0
    %859 = vmatpush1.msra.mxu0 %v40
    %860 = vmatprep.subr.mxu0 0.0
    %861 = vmatpush1.msra.mxu0 %v41
    %862 = vmatprep.subr.mxu0 0.0
    %863 = vmatpush1.msra.mxu0 %v42
    %864 = vmatprep.subr.mxu0 0.0
    %865 = vmatpush1.msra.mxu0 %v43
    %866 = vmatprep.subr.mxu0 0.0
    %867 = vmatpush1.msra.mxu0 %v44
    %868 = vmatprep.subr.mxu0 0.0
    %869 = vmatpush1.msra.mxu0 %v45
    %870 = vmatprep.subr.mxu0 0.0
    %871 = vmatpush1.msra.mxu0 %v46
    %872 = vmatprep.subr.mxu0 0.0
    %873 = vmatpush1.msra.mxu0 %v47
    %874 = vmatprep.subr.mxu0 0.0
    %875 = vmatpush1.msra.mxu0 %v48
    %876 = vmatprep.subr.mxu0 0.0
    %877 = vmatpush1.msra.mxu0 %v49
    %878 = vmatprep.subr.mxu0 0.0
    %879 = vmatpush1.msra.mxu0 %v50
    %880 = vmatprep.subr.mxu0 0.0
    %881 = vmatpush1.msra.mxu0 %v51
    %882 = vmatprep.subr.mxu0 0.0
    %883 = vmatpush1.msra.mxu0 %v52
    %884 = vmatprep.subr.mxu0 0.0
    %885 = vmatpush1.msra.mxu0 %v53
    %886 = vmatprep.subr.mxu0 0.0
    %887 = vmatpush1.msra.mxu0 %v54
    %888 = vmatprep.subr.mxu0 0.0
    %889 = vmatpush1.msra.mxu0 %v55
    %890 = vmatprep.subr.mxu0 0.0
    %891 = vmatpush1.msra.mxu0 %v56
    %892 = vmatprep.subr.mxu0 0.0
    %893 = vmatpush1.msra.mxu0 %v57
    %894 = vmatprep.subr.mxu0 0.0
    %895 = vmatpush1.msra.mxu0 %v58
    %896 = vmatprep.subr.mxu0 0.0
    %897 = vmatpush1.msra.mxu0 %v59
    %898 = vmatprep.subr.mxu0 0.0
    %899 = vmatpush1.msra.mxu0 %v60
    %900 = vmatprep.mubr.f32.mxu0 %v833
    %901 = vmatmul.mubr.f32.gmra.mrb[0].mxu0 %v832
    %v902 = vpop.f32.mrb[0].mxu0
    %v903 = vadd.f32 0.0, %v902
    %v904 = vpop.f32.mrb[0].mxu0
    %905 = vdwg.mxu0
    %906 = vmatprep.subr.mxu0 0.0
    %907 = vmatpush1.msra.mxu0 %v61
    %908 = vmatprep.subr.mxu0 0.0
    %909 = vmatpush1.msra.mxu0 %v62
    %910 = vmatprep.subr.mxu0 0.0
    %911 = vmatpush1.msra.mxu0 %v63
    %912 = vmatprep.subr.mxu0 0.0
    %913 = vmatpush1.msra.mxu0 %v64
    %914 = vmatprep.subr.mxu0 0.0
    %915 = vmatpush1.msra.mxu0 %v65
    %916 = vmatprep.subr.mxu0 0.0
    %917 = vmatpush1.msra.mxu0 %v66
    %918 = vmatprep.subr.mxu0 0.0
    %919 = vmatpush1.msra.mxu0 %v67
    %920 = vmatprep.subr.mxu0 0.0
    %921 = vmatpush1.msra.mxu0 %v68
    %922 = vmatprep.subr.mxu0 0.0
    %923 = vmatpush1.msra.mxu0 %v69
    %924 = vmatprep.subr.mxu0 0.0
    %925 = vmatpush1.msra.mxu0 %v70
    %926 = vmatprep.subr.mxu0 0.0
    %927 = vmatpush1.msra.mxu0 %v71
    %928 = vmatprep.subr.mxu0 0.0
    %929 = vmatpush1.msra.mxu0 %v72
    %930 = vmatprep.subr.mxu0 0.0
    %931 = vmatpush1.msra.mxu0 %v73
    %932 = vmatprep.subr.mxu0 0.0
    %933 = vmatpush1.msra.mxu0 %v74
    %934 = vmatprep.subr.mxu0 0.0
    %935 = vmatpush1.msra.mxu0 %v75
    %936 = vmatprep.subr.mxu0 0.0
    %937 = vmatpush1.msra.mxu0 %v76
    %938 = vmatprep.subr.mxu0 0.0
    %939 = vmatpush1.msra.mxu0 %v77
    %940 = vmatprep.subr.mxu0 0.0
    %941 = vmatpush1.msra.mxu0 %v78
    %942 = vmatprep.subr.mxu0 0.0
    %943 = vmatpush1.msra.mxu0 %v79
    %944 = vmatprep.subr.mxu0 0.0
    %945 = vmatpush1.msra.mxu0 %v80
    %946 = vmatprep.subr.mxu0 0.0
    %947 = vmatpush1.msra.mxu0 %v81
    %948 = vmatprep.subr.mxu0 0.0
    %949 = vmatpush1.msra.mxu0 %v82
    %950 = vmatprep.subr.mxu0 0.0
    %951 = vmatpush1.msra.mxu0 %v83
    %952 = vmatprep.subr.mxu0 0.0
    %953 = vmatpush1.msra.mxu0 %v84
    %954 = vmatprep.subr.mxu0 0.0
    %955 = vmatpush1.msra.mxu0 %v85
    %956 = vmatprep.subr.mxu0 0.0
    %957 = vmatpush1.msra.mxu0 %v86
    %958 = vmatprep.subr.mxu0 0.0
    %959 = vmatpush1.msra.mxu0 %v87
    %960 = vmatprep.subr.mxu0 0.0
    %961 = vmatpush1.msra.mxu0 %v88
    %962 = vmatprep.subr.mxu0 0.0
    %963 = vmatpush1.msra.mxu0 %v89
    %964 = vmatprep.subr.mxu0 0.0
    %965 = vmatpush1.msra.mxu0 %v90
    %966 = vmatprep.subr.mxu0 0.0
    %967 = vmatpush1.msra.mxu0 %v91
    %968 = vmatprep.subr.mxu0 0.0
    %969 = vmatpush1.msra.mxu0 %v92
    %970 = vmatprep.mubr.f32.mxu0 %v835
    %971 = vmatmul.mubr.f32.gmra.mrb[0].mxu0 %v834
    %v972 = vpop.f32.mrb[0].mxu0
    %v973 = vadd.f32 %v903, %v972
    %v974 = vpop.f32.mrb[0].mxu0
    %975 = vdwg.mxu0
    %v976 = vld [vmem:[%s4 + $0x20] sm:$0xff]
    %vm977 = vcmask 64512
    %v979 = vsel %vm977, %v976, 0
    %981 = vmatprep.subr.mxu0 0.0
    %982 = vmatpush1.msra.mxu0 %v973
    %983 = vmatprep.subr.mxu0 0.0
    %984 = vmatpush1.msra.mxu0 0.0
    %985 = vmatprep.subr.mxu0 0.0
    %986 = vmatpush1.msra.mxu0 0.0
    %987 = vmatprep.subr.mxu0 0.0
    %988 = vmatpush1.msra.mxu0 0.0
    %989 = vmatprep.subr.mxu0 0.0
    %990 = vmatpush1.msra.mxu0 0.0
    %991 = vmatprep.subr.mxu0 0.0
    %992 = vmatpush1.msra.mxu0 0.0
    %993 = vmatprep.subr.mxu0 0.0
    %994 = vmatpush1.msra.mxu0 0.0
    %995 = vmatprep.subr.mxu0 0.0
    %996 = vmatpush1.msra.mxu0 0.0
    %997 = vmatprep.subr.mxu0 0.0
    %998 = vmatpush1.msra.mxu0 0.0
    %999 = vmatprep.subr.mxu0 0.0
    %1000 = vmatpush1.msra.mxu0 0.0
    %1001 = vmatprep.subr.mxu0 0.0
    %1002 = vmatpush1.msra.mxu0 0.0
    %1003 = vmatprep.subr.mxu0 0.0
    %1004 = vmatpush1.msra.mxu0 0.0
    %1005 = vmatprep.subr.mxu0 0.0
    %1006 = vmatpush1.msra.mxu0 0.0
    %1007 = vmatprep.subr.mxu0 0.0
    %1008 = vmatpush1.msra.mxu0 0.0
    %1009 = vmatprep.subr.mxu0 0.0
    %1010 = vmatpush1.msra.mxu0 0.0
    %1011 = vmatprep.subr.mxu0 0.0
    %1012 = vmatpush1.msra.mxu0 0.0
    %1013 = vmatprep.subr.mxu0 0.0
    %1014 = vmatpush1.msra.mxu0 0.0
    %1015 = vmatprep.subr.mxu0 0.0
    %1016 = vmatpush1.msra.mxu0 0.0
    %1017 = vmatprep.subr.mxu0 0.0
    %1018 = vmatpush1.msra.mxu0 0.0
    %1019 = vmatprep.subr.mxu0 0.0
    %1020 = vmatpush1.msra.mxu0 0.0
    %1021 = vmatprep.subr.mxu0 0.0
    %1022 = vmatpush1.msra.mxu0 0.0
    %1023 = vmatprep.subr.mxu0 0.0
    %1024 = vmatpush1.msra.mxu0 0.0
    %1025 = vmatprep.subr.mxu0 0.0
    %1026 = vmatpush1.msra.mxu0 0.0
    %1027 = vmatprep.subr.mxu0 0.0
    %1028 = vmatpush1.msra.mxu0 0.0
    %1029 = vmatprep.subr.mxu0 0.0
    %1030 = vmatpush1.msra.mxu0 0.0
    %1031 = vmatprep.subr.mxu0 0.0
    %1032 = vmatpush1.msra.mxu0 0.0
    %1033 = vmatprep.subr.mxu0 0.0
    %1034 = vmatpush1.msra.mxu0 0.0
    %1035 = vmatprep.subr.mxu0 0.0
    %1036 = vmatpush1.msra.mxu0 0.0
    %1037 = vmatprep.subr.mxu0 0.0
    %1038 = vmatpush1.msra.mxu0 0.0
    %1039 = vmatprep.subr.mxu0 0.0
    %1040 = vmatpush1.msra.mxu0 0.0
    %1041 = vmatprep.subr.mxu0 0.0
    %1042 = vmatpush1.msra.mxu0 0.0
    %1043 = vmatprep.subr.mxu0 0.0
    %1044 = vmatpush1.msra.mxu0 0.0
    %1045 = vmatprep.mubr.f32.mxu0 0.0
    %1046 = vmatmul.mubr.f32.gmra.mrb[0].mxu0 %v979
    %v1047 = vpop.f32.mrb[0].mxu0
    %v1048 = vadd.f32 0.0, %v1047
    %v1049 = vpop.f32.mrb[0].mxu0
    %1050 = vdwg.mxu0
    %v1051 = vmax.f32 %v1048, 0.0
    %v1052 = vld [vmem:[%s4 + $0x28] sm:$0xff]
    %v1054 = vsel %vm977, %v1052, 0
    %1056 = vmatprep.subr.mxu0 0.0
    %1057 = vmatpush1.msra.mxu0 %v1051
    %1058 = vmatprep.subr.mxu0 0.0
    %1059 = vmatpush1.msra.mxu0 0.0
    %1060 = vmatprep.subr.mxu0 0.0
    %1061 = vmatpush1.msra.mxu0 0.0
    %1062 = vmatprep.subr.mxu0 0.0
    %1063 = vmatpush1.msra.mxu0 0.0
    %1064 = vmatprep.subr.mxu0 0.0
    %1065 = vmatpush1.msra.mxu0 0.0
    %1066 = vmatprep.subr.mxu0 0.0
    %1067 = vmatpush1.msra.mxu0 0.0
    %1068 = vmatprep.subr.mxu0 0.0
    %1069 = vmatpush1.msra.mxu0 0.0
    %1070 = vmatprep.subr.mxu0 0.0
    %1071 = vmatpush1.msra.mxu0 0.0
    %1072 = vmatprep.subr.mxu0 0.0
    %1073 = vmatpush1.msra.mxu0 0.0
    %1074 = vmatprep.subr.mxu0 0.0
    %1075 = vmatpush1.msra.mxu0 0.0
    %1076 = vmatprep.subr.mxu0 0.0
    %1077 = vmatpush1.msra.mxu0 0.0
    %1078 = vmatprep.subr.mxu0 0.0
    %1079 = vmatpush1.msra.mxu0 0.0
    %1080 = vmatprep.subr.mxu0 0.0
    %1081 = vmatpush1.msra.mxu0 0.0
    %1082 = vmatprep.subr.mxu0 0.0
    %1083 = vmatpush1.msra.mxu0 0.0
    %1084 = vmatprep.subr.mxu0 0.0
    %1085 = vmatpush1.msra.mxu0 0.0
    %1086 = vmatprep.subr.mxu0 0.0
    %1087 = vmatpush1.msra.mxu0 0.0
    %1088 = vmatprep.subr.mxu0 0.0
    %1089 = vmatpush1.msra.mxu0 0.0
    %1090 = vmatprep.subr.mxu0 0.0
    %1091 = vmatpush1.msra.mxu0 0.0
    %1092 = vmatprep.subr.mxu0 0.0
    %1093 = vmatpush1.msra.mxu0 0.0
    %1094 = vmatprep.subr.mxu0 0.0
    %1095 = vmatpush1.msra.mxu0 0.0
    %1096 = vmatprep.subr.mxu0 0.0
    %1097 = vmatpush1.msra.mxu0 0.0
    %1098 = vmatprep.subr.mxu0 0.0
    %1099 = vmatpush1.msra.mxu0 0.0
    %1100 = vmatprep.subr.mxu0 0.0
    %1101 = vmatpush1.msra.mxu0 0.0
    %1102 = vmatprep.subr.mxu0 0.0
    %1103 = vmatpush1.msra.mxu0 0.0
    %1104 = vmatprep.subr.mxu0 0.0
    %1105 = vmatpush1.msra.mxu0 0.0
    %1106 = vmatprep.subr.mxu0 0.0
    %1107 = vmatpush1.msra.mxu0 0.0
    %1108 = vmatprep.subr.mxu0 0.0
    %1109 = vmatpush1.msra.mxu0 0.0
    %1110 = vmatprep.subr.mxu0 0.0
    %1111 = vmatpush1.msra.mxu0 0.0
    %1112 = vmatprep.subr.mxu0 0.0
    %1113 = vmatpush1.msra.mxu0 0.0
    %1114 = vmatprep.subr.mxu0 0.0
    %1115 = vmatpush1.msra.mxu0 0.0
    %1116 = vmatprep.subr.mxu0 0.0
    %1117 = vmatpush1.msra.mxu0 0.0
    %1118 = vmatprep.subr.mxu0 0.0
    %1119 = vmatpush1.msra.mxu0 0.0
    %1120 = vmatprep.mubr.f32.mxu0 0.0
    %1121 = vmatmul.mubr.f32.gmra.mrb[0].mxu0 %v1054
    %v1122 = vpop.f32.mrb[0].mxu0
    %v1123 = vadd.f32 0.0, %v1122
    %v1124 = vpop.f32.mrb[0].mxu0
    %1125 = vdwg.mxu0
    %v1126 = vxor.u32 %v1123, 2147483648
    %v1127 = vmul.f32 %v1126, 1.442695
    %v1128 = vpow.pop %v1127
    %v1129 = vadd.f32 %v1128, 1.0
    %v1130 = vrcp.pop %v1129
    %v1131 = vmul.f32 1.0, %v1130
    %v1133 = vsel %vm977, %v1131, 0
    %1135 = vmatprep.subr.mxu0 %v26
    %1136 = vmatpush1.msra.mxu0 %v25
    %1137 = vmatprep.subr.mxu0 0.0
    %1138 = vmatpush1.msra.mxu0 0.0
    %1139 = vmatprep.subr.mxu0 0.0
    %1140 = vmatpush1.msra.mxu0 0.0
    %1141 = vmatprep.subr.mxu0 0.0
    %1142 = vmatpush1.msra.mxu0 0.0
    %1143 = vmatprep.subr.mxu0 0.0
    %1144 = vmatpush1.msra.mxu0 0.0
    %1145 = vmatprep.subr.mxu0 0.0
    %1146 = vmatpush1.msra.mxu0 0.0
    %1147 = vmatprep.subr.mxu0 0.0
    %1148 = vmatpush1.msra.mxu0 0.0
    %1149 = vmatprep.subr.mxu0 0.0
    %1150 = vmatpush1.msra.mxu0 0.0
    %1151 = vmatprep.subr.mxu0 0.0
    %1152 = vmatpush1.msra.mxu0 0.0
    %1153 = vmatprep.subr.mxu0 0.0
    %1154 = vmatpush1.msra.mxu0 0.0
    %1155 = vmatprep.subr.mxu0 0.0
    %1156 = vmatpush1.msra.mxu0 0.0
    %1157 = vmatprep.subr.mxu0 0.0
    %1158 = vmatpush1.msra.mxu0 0.0
    %1159 = vmatprep.subr.mxu0 0.0
    %1160 = vmatpush1.msra.mxu0 0.0
    %1161 = vmatprep.subr.mxu0 0.0
    %1162 = vmatpush1.msra.mxu0 0.0
    %1163 = vmatprep.subr.mxu0 0.0
    %1164 = vmatpush1.msra.mxu0 0.0
    %1165 = vmatprep.subr.mxu0 0.0
    %1166 = vmatpush1.msra.mxu0 0.0
    %1167 = vmatprep.subr.mxu0 0.0
    %1168 = vmatpush1.msra.mxu0 0.0
    %1169 = vmatprep.subr.mxu0 0.0
    %1170 = vmatpush1.msra.mxu0 0.0
    %1171 = vmatprep.subr.mxu0 0.0
    %1172 = vmatpush1.msra.mxu0 0.0
    %1173 = vmatprep.subr.mxu0 0.0
    %1174 = vmatpush1.msra.mxu0 0.0
    %1175 = vmatprep.subr.mxu0 0.0
    %1176 = vmatpush1.msra.mxu0 0.0
    %1177 = vmatprep.subr.mxu0 0.0
    %1178 = vmatpush1.msra.mxu0 0.0
    %1179 = vmatprep.subr.mxu0 0.0
    %1180 = vmatpush1.msra.mxu0 0.0
    %1181 = vmatprep.subr.mxu0 0.0
    %1182 = vmatpush1.msra.mxu0 0.0
    %1183 = vmatprep.subr.mxu0 0.0
    %1184 = vmatpush1.msra.mxu0 0.0
    %1185 = vmatprep.subr.mxu0 0.0
    %1186 = vmatpush1.msra.mxu0 0.0
    %1187 = vmatprep.subr.mxu0 0.0
    %1188 = vmatpush1.msra.mxu0 0.0
    %1189 = vmatprep.subr.mxu0 0.0
    %1190 = vmatpush1.msra.mxu0 0.0
    %1191 = vmatprep.subr.mxu0 0.0
    %1192 = vmatpush1.msra.mxu0 0.0
    %1193 = vmatprep.subr.mxu0 0.0
    %1194 = vmatpush1.msra.mxu0 0.0
    %1195 = vmatprep.subr.mxu0 0.0
    %1196 = vmatpush1.msra.mxu0 0.0
    %1197 = vmatprep.subr.mxu0 0.0
    %1198 = vmatpush1.msra.mxu0 0.0
    %1199 = vmatprep.mubr.f32.mxu0 0.0
    %1200 = vmatmul.mubr.f32.gmra.mrb[0].mxu0 %v1133
    %v1201 = vpop.f32.mrb[0].mxu0
    %v1202 = vadd.f32 0.0, %v1201
    %v1203 = vpop.f32.mrb[0].mxu0
    %v1204 = vadd.f32 0.0, %v1203
    %1205 = vdwg.mxu0
    %1206 = vmatprep.subr.mxu0 %v28
    %1207 = vmatpush1.msra.mxu0 %v27
    %1208 = vmatprep.subr.mxu0 0.0
    %1209 = vmatpush1.msra.mxu0 0.0
    %1210 = vmatprep.subr.mxu0 0.0
    %1211 = vmatpush1.msra.mxu0 0.0
    %1212 = vmatprep.subr.mxu0 0.0
    %1213 = vmatpush1.msra.mxu0 0.0
    %1214 = vmatprep.subr.mxu0 0.0
    %1215 = vmatpush1.msra.mxu0 0.0
    %1216 = vmatprep.subr.mxu0 0.0
    %1217 = vmatpush1.msra.mxu0 0.0
    %1218 = vmatprep.subr.mxu0 0.0
    %1219 = vmatpush1.msra.mxu0 0.0
    %1220 = vmatprep.subr.mxu0 0.0
    %1221 = vmatpush1.msra.mxu0 0.0
    %1222 = vmatprep.subr.mxu0 0.0
    %1223 = vmatpush1.msra.mxu0 0.0
    %1224 = vmatprep.subr.mxu0 0.0
    %1225 = vmatpush1.msra.mxu0 0.0
    %1226 = vmatprep.subr.mxu0 0.0
    %1227 = vmatpush1.msra.mxu0 0.0
    %1228 = vmatprep.subr.mxu0 0.0
    %1229 = vmatpush1.msra.mxu0 0.0
    %1230 = vmatprep.subr.mxu0 0.0
    %1231 = vmatpush1.msra.mxu0 0.0
    %1232 = vmatprep.subr.mxu0 0.0
    %1233 = vmatpush1.msra.mxu0 0.0
    %1234 = vmatprep.subr.mxu0 0.0
    %1235 = vmatpush1.msra.mxu0 0.0
    %1236 = vmatprep.subr.mxu0 0.0
    %1237 = vmatpush1.msra.mxu0 0.0
    %1238 = vmatprep.subr.mxu0 0.0
    %1239 = vmatpush1.msra.mxu0 0.0
    %1240 = vmatprep.subr.mxu0 0.0
    %1241 = vmatpush1.msra.mxu0 0.0
    %1242 = vmatprep.subr.mxu0 0.0
    %1243 = vmatpush1.msra.mxu0 0.0
    %1244 = vmatprep.subr.mxu0 0.0
    %1245 = vmatpush1.msra.mxu0 0.0
    %1246 = vmatprep.subr.mxu0 0.0
    %1247 = vmatpush1.msra.mxu0 0.0
    %1248 = vmatprep.subr.mxu0 0.0
    %1249 = vmatpush1.msra.mxu0 0.0
    %1250 = vmatprep.subr.mxu0 0.0
    %1251 = vmatpush1.msra.mxu0 0.0
    %1252 = vmatprep.subr.mxu0 0.0
    %1253 = vmatpush1.msra.mxu0 0.0
    %1254 = vmatprep.subr.mxu0 0.0
    %1255 = vmatpush1.msra.mxu0 0.0
    %1256 = vmatprep.subr.mxu0 0.0
    %1257 = vmatpush1.msra.mxu0 0.0
    %1258 = vmatprep.subr.mxu0 0.0
    %1259 = vmatpush1.msra.mxu0 0.0
    %1260 = vmatprep.subr.mxu0 0.0
    %1261 = vmatpush1.msra.mxu0 0.0
    %1262 = vmatprep.subr.mxu0 0.0
    %1263 = vmatpush1.msra.mxu0 0.0
    %1264 = vmatprep.subr.mxu0 0.0
    %1265 = vmatpush1.msra.mxu0 0.0
    %1266 = vmatprep.subr.mxu0 0.0
    %1267 = vmatpush1.msra.mxu0 0.0
    %1268 = vmatprep.subr.mxu0 0.0
    %1269 = vmatpush1.msra.mxu0 0.0
    %1270 = vmatprep.mubr.f32.mxu0 0.0
    %1271 = vmatmul.mubr.f32.gmra.mrb[0].mxu0 %v1133
    %v1272 = vpop.f32.mrb[0].mxu0
    %v1273 = vadd.f32 0.0, %v1272
    %v1274 = vpop.f32.mrb[0].mxu0
    %v1275 = vadd.f32 0.0, %v1274
    %1276 = vdwg.mxu0
    %v1277 = vmul.f32 %v832, %v1202
    %v1278 = vmul.f32 %v833, %v1204
    %v1279 = vmul.f32 %v834, %v1273
    %v1280 = vmul.f32 %v835, %v1275
    %1281 = vrot.lane.b32.xlu0 %v1277, 17
    %v1282 = vpop.permute.xlu0 %1281
    %1283 = vrot.lane.b32.xlu0 %v1278, 17
    %v1284 = vpop.permute.xlu0 %1283
    %1285 = vrot.lane.b32.xlu0 %v1279, 17
    %v1286 = vpop.permute.xlu0 %1285
    %1287 = vrot.lane.b32.xlu0 %v1280, 17
    %v1288 = vpop.permute.xlu0 %1287
    %v1289 = vsel %vm111, %v1286, %v1288
    %v1290 = vsel %vm111, %v1284, %v1286
    %v1291 = vsel %vm111, %v1282, %v1284
    %v1292 = vsel %vm111, %v1288, %v1282
    %v1293 = vmul.f32 %v1292, %v119
    %v1294 = vmul.f32 %v1291, %v123
    %v1295 = vmul.f32 %v1290, %v127
    %v1296 = vmul.f32 %v1289, %v131
    %1297 = vrot.lane.b32.xlu0 %v1277, 16
    %v1298 = vpop.permute.xlu0 %1297
    %1299 = vrot.lane.b32.xlu0 %v1278, 16
    %v1300 = vpop.permute.xlu0 %1299
    %1301 = vrot.lane.b32.xlu0 %v1279, 16
    %v1302 = vpop.permute.xlu0 %1301
    %1303 = vrot.lane.b32.xlu0 %v1280, 16
    %v1304 = vpop.permute.xlu0 %1303
    %v1305 = vsel %vm144, %v1302, %v1304
    %v1306 = vsel %vm144, %v1300, %v1302
    %v1307 = vsel %vm144, %v1298, %v1300
    %v1308 = vsel %vm144, %v1304, %v1298
    %v1309 = vmul.f32 %v1308, %v152
    %v1310 = vmul.f32 %v1307, %v156
    %v1311 = vmul.f32 %v1306, %v160
    %v1312 = vmul.f32 %v1305, %v164
    %1313 = vrot.lane.b32.xlu0 %v1277, 15
    %v1314 = vpop.permute.xlu0 %1313
    %1315 = vrot.lane.b32.xlu0 %v1278, 15
    %v1316 = vpop.permute.xlu0 %1315
    %1317 = vrot.lane.b32.xlu0 %v1279, 15
    %v1318 = vpop.permute.xlu0 %1317
    %1319 = vrot.lane.b32.xlu0 %v1280, 15
    %v1320 = vpop.permute.xlu0 %1319
    %v1321 = vsel %vm177, %v1318, %v1320
    %v1322 = vsel %vm177, %v1316, %v1318
    %v1323 = vsel %vm177, %v1314, %v1316
    %v1324 = vsel %vm177, %v1320, %v1314
    %v1325 = vmul.f32 %v1324, %v185
    %v1326 = vmul.f32 %v1323, %v189
    %v1327 = vmul.f32 %v1322, %v193
    %v1328 = vmul.f32 %v1321, %v197
    %1329 = vrot.lane.b32.xlu0 %v1277, 1
    %v1330 = vpop.permute.xlu0 %1329
    %1331 = vrot.lane.b32.xlu0 %v1278, 1
    %v1332 = vpop.permute.xlu0 %1331
    %1333 = vrot.lane.b32.xlu0 %v1279, 1
    %v1334 = vpop.permute.xlu0 %1333
    %1335 = vrot.lane.b32.xlu0 %v1280, 1
    %v1336 = vpop.permute.xlu0 %1335
    %v1337 = vsel %vm210, %v1334, %v1336
    %v1338 = vsel %vm210, %v1332, %v1334
    %v1339 = vsel %vm210, %v1330, %v1332
    %v1340 = vsel %vm210, %v1336, %v1330
    %v1341 = vmul.f32 %v1340, %v218
    %v1342 = vmul.f32 %v1339, %v222
    %v1343 = vmul.f32 %v1338, %v226
    %v1344 = vmul.f32 %v1337, %v230
    %1345 = vrot.lane.b32.xlu0 %v1277, 127
    %v1346 = vpop.permute.xlu0 %1345
    %1347 = vrot.lane.b32.xlu0 %v1278, 127
    %v1348 = vpop.permute.xlu0 %1347
    %1349 = vrot.lane.b32.xlu0 %v1279, 127
    %v1350 = vpop.permute.xlu0 %1349
    %1351 = vrot.lane.b32.xlu0 %v1280, 127
    %v1352 = vpop.permute.xlu0 %1351
    %v1353 = vsel %vm243, %v1350, %v1352
    %v1354 = vsel %vm243, %v1348, %v1350
    %v1355 = vsel %vm243, %v1346, %v1348
    %v1356 = vsel %vm243, %v1352, %v1346
    %v1357 = vmul.f32 %v1355, %v251
    %v1358 = vmul.f32 %v1354, %v255
    %v1359 = vmul.f32 %v1353, %v259
    %v1360 = vmul.f32 %v1356, %v263
    %1361 = vrot.lane.b32.xlu0 %v1277, 113
    %v1362 = vpop.permute.xlu0 %1361
    %1363 = vrot.lane.b32.xlu0 %v1278, 113
    %v1364 = vpop.permute.xlu0 %1363
    %1365 = vrot.lane.b32.xlu0 %v1279, 113
    %v1366 = vpop.permute.xlu0 %1365
    %1367 = vrot.lane.b32.xlu0 %v1280, 113
    %v1368 = vpop.permute.xlu0 %1367
    %v1369 = vsel %vm276, %v1366, %v1368
    %v1370 = vsel %vm276, %v1364, %v1366
    %v1371 = vsel %vm276, %v1362, %v1364
    %v1372 = vsel %vm276, %v1368, %v1362
    %v1373 = vmul.f32 %v1371, %v284
    %v1374 = vmul.f32 %v1370, %v288
    %v1375 = vmul.f32 %v1369, %v292
    %v1376 = vmul.f32 %v1372, %v296
    %1377 = vrot.lane.b32.xlu0 %v1277, 112
    %v1378 = vpop.permute.xlu0 %1377
    %1379 = vrot.lane.b32.xlu0 %v1278, 112
    %v1380 = vpop.permute.xlu0 %1379
    %1381 = vrot.lane.b32.xlu0 %v1279, 112
    %v1382 = vpop.permute.xlu0 %1381
    %1383 = vrot.lane.b32.xlu0 %v1280, 112
    %v1384 = vpop.permute.xlu0 %1383
    %v1385 = vsel %vm309, %v1382, %v1384
    %v1386 = vsel %vm309, %v1380, %v1382
    %v1387 = vsel %vm309, %v1378, %v1380
    %v1388 = vsel %vm309, %v1384, %v1378
    %v1389 = vmul.f32 %v1387, %v317
    %v1390 = vmul.f32 %v1386, %v321
    %v1391 = vmul.f32 %v1385, %v325
    %v1392 = vmul.f32 %v1388, %v329
    %1393 = vrot.lane.b32.xlu0 %v1277, 111
    %v1394 = vpop.permute.xlu0 %1393
    %1395 = vrot.lane.b32.xlu0 %v1278, 111
    %v1396 = vpop.permute.xlu0 %1395
    %1397 = vrot.lane.b32.xlu0 %v1279, 111
    %v1398 = vpop.permute.xlu0 %1397
    %1399 = vrot.lane.b32.xlu0 %v1280, 111
    %v1400 = vpop.permute.xlu0 %1399
    %v1401 = vsel %vm342, %v1398, %v1400
    %v1402 = vsel %vm342, %v1396, %v1398
    %v1403 = vsel %vm342, %v1394, %v1396
    %v1404 = vsel %vm342, %v1400, %v1394
    %v1405 = vmul.f32 %v1403, %v350
    %v1406 = vmul.f32 %v1402, %v354
    %v1407 = vmul.f32 %v1401, %v358
    %v1408 = vmul.f32 %v1404, %v362
    %v1409 = vld [vmem:[%s4 + $0x10] sm:$0xff]
    %1410 = vset.pattern.permute.xlu0 2
    %1411 = vperm.xlu0 %1410, %v681
    %v1412 = vpop.permute.xlu0 %1411
    %vm1414 = vcmask 588800
    %v1416 = vsel %vm1414, %v1409, 0
    %1418 = vmatprep.subr.mxu0 %v1294
    %1419 = vmatpush1.msra.mxu0 %v1293
    %1420 = vmatprep.subr.mxu0 %v1310
    %1421 = vmatpush1.msra.mxu0 %v1309
    %1422 = vmatprep.subr.mxu0 %v1326
    %1423 = vmatpush1.msra.mxu0 %v1325
    %1424 = vmatprep.subr.mxu0 %v1342
    %1425 = vmatpush1.msra.mxu0 %v1341
    %1426 = vmatprep.subr.mxu0 %v1278
    %1427 = vmatpush1.msra.mxu0 %v1277
    %1428 = vmatprep.subr.mxu0 %v1358
    %1429 = vmatpush1.msra.mxu0 %v1357
    %1430 = vmatprep.subr.mxu0 %v1374
    %1431 = vmatpush1.msra.mxu0 %v1373
    %1432 = vmatprep.subr.mxu0 %v1390
    %1433 = vmatpush1.msra.mxu0 %v1389
    %1434 = vmatprep.subr.mxu0 %v1406
    %1435 = vmatpush1.msra.mxu0 %v1405
    %1436 = vmatprep.subr.mxu0 0.0
    %1437 = vmatpush1.msra.mxu0 0.0
    %1438 = vmatprep.subr.mxu0 0.0
    %1439 = vmatpush1.msra.mxu0 0.0
    %1440 = vmatprep.subr.mxu0 0.0
    %1441 = vmatpush1.msra.mxu0 0.0
    %1442 = vmatprep.subr.mxu0 0.0
    %1443 = vmatpush1.msra.mxu0 0.0
    %1444 = vmatprep.subr.mxu0 0.0
    %1445 = vmatpush1.msra.mxu0 0.0
    %1446 = vmatprep.subr.mxu0 0.0
    %1447 = vmatpush1.msra.mxu0 0.0
    %1448 = vmatprep.subr.mxu0 0.0
    %1449 = vmatpush1.msra.mxu0 0.0
    %1450 = vmatprep.subr.mxu0 0.0
    %1451 = vmatpush1.msra.mxu0 0.0
    %1452 = vmatprep.subr.mxu0 0.0
    %1453 = vmatpush1.msra.mxu0 0.0
    %1454 = vmatprep.subr.mxu0 0.0
    %1455 = vmatpush1.msra.mxu0 0.0
    %1456 = vmatprep.subr.mxu0 0.0
    %1457 = vmatpush1.msra.mxu0 0.0
    %1458 = vmatprep.subr.mxu0 0.0
    %1459 = vmatpush1.msra.mxu0 0.0
    %1460 = vmatprep.subr.mxu0 0.0
    %1461 = vmatpush1.msra.mxu0 0.0
    %1462 = vmatprep.subr.mxu0 0.0
    %1463 = vmatpush1.msra.mxu0 0.0
    %1464 = vmatprep.subr.mxu0 0.0
    %1465 = vmatpush1.msra.mxu0 0.0
    %1466 = vmatprep.subr.mxu0 0.0
    %1467 = vmatpush1.msra.mxu0 0.0
    %1468 = vmatprep.subr.mxu0 0.0
    %1469 = vmatpush1.msra.mxu0 0.0
    %1470 = vmatprep.subr.mxu0 0.0
    %1471 = vmatpush1.msra.mxu0 0.0
    %1472 = vmatprep.subr.mxu0 0.0
    %1473 = vmatpush1.msra.mxu0 0.0
    %1474 = vmatprep.subr.mxu0 0.0
    %1475 = vmatpush1.msra.mxu0 0.0
    %1476 = vmatprep.subr.mxu0 0.0
    %1477 = vmatpush1.msra.mxu0 0.0
    %1478 = vmatprep.subr.mxu0 0.0
    %1479 = vmatpush1.msra.mxu0 0.0
    %1480 = vmatprep.subr.mxu0 0.0
    %1481 = vmatpush1.msra.mxu0 0.0
    %1482 = vmatprep.mubr.f32.mxu0 0.0
    %1483 = vmatmul.mubr.f32.gmra.mrb[0].mxu0 %v1416
    %v1484 = vpop.f32.mrb[0].mxu0
    %v1485 = vadd.f32 %v1412, %v1484
    %v1486 = vpop.f32.mrb[0].mxu0
    %v1487 = vadd.f32 %v1412, %v1486
    %1488 = vdwg.mxu0
    %1489 = vmatprep.subr.mxu0 %v1296
    %1490 = vmatpush1.msra.mxu0 %v1295
    %1491 = vmatprep.subr.mxu0 %v1312
    %1492 = vmatpush1.msra.mxu0 %v1311
    %1493 = vmatprep.subr.mxu0 %v1328
    %1494 = vmatpush1.msra.mxu0 %v1327
    %1495 = vmatprep.subr.mxu0 %v1344
    %1496 = vmatpush1.msra.mxu0 %v1343
    %1497 = vmatprep.subr.mxu0 %v1280
    %1498 = vmatpush1.msra.mxu0 %v1279
    %1499 = vmatprep.subr.mxu0 %v1360
    %1500 = vmatpush1.msra.mxu0 %v1359
    %1501 = vmatprep.subr.mxu0 %v1376
    %1502 = vmatpush1.msra.mxu0 %v1375
    %1503 = vmatprep.subr.mxu0 %v1392
    %1504 = vmatpush1.msra.mxu0 %v1391
    %1505 = vmatprep.subr.mxu0 %v1408
    %1506 = vmatpush1.msra.mxu0 %v1407
    %1507 = vmatprep.subr.mxu0 0.0
    %1508 = vmatpush1.msra.mxu0 0.0
    %1509 = vmatprep.subr.mxu0 0.0
    %1510 = vmatpush1.msra.mxu0 0.0
    %1511 = vmatprep.subr.mxu0 0.0
    %1512 = vmatpush1.msra.mxu0 0.0
    %1513 = vmatprep.subr.mxu0 0.0
    %1514 = vmatpush1.msra.mxu0 0.0
    %1515 = vmatprep.subr.mxu0 0.0
    %1516 = vmatpush1.msra.mxu0 0.0
    %1517 = vmatprep.subr.mxu0 0.0
    %1518 = vmatpush1.msra.mxu0 0.0
    %1519 = vmatprep.subr.mxu0 0.0
    %1520 = vmatpush1.msra.mxu0 0.0
    %1521 = vmatprep.subr.mxu0 0.0
    %1522 = vmatpush1.msra.mxu0 0.0
    %1523 = vmatprep.subr.mxu0 0.0
    %1524 = vmatpush1.msra.mxu0 0.0
    %1525 = vmatprep.subr.mxu0 0.0
    %1526 = vmatpush1.msra.mxu0 0.0
    %1527 = vmatprep.subr.mxu0 0.0
    %1528 = vmatpush1.msra.mxu0 0.0
    %1529 = vmatprep.subr.mxu0 0.0
    %1530 = vmatpush1.msra.mxu0 0.0
    %1531 = vmatprep.subr.mxu0 0.0
    %1532 = vmatpush1.msra.mxu0 0.0
    %1533 = vmatprep.subr.mxu0 0.0
    %1534 = vmatpush1.msra.mxu0 0.0
    %1535 = vmatprep.subr.mxu0 0.0
    %1536 = vmatpush1.msra.mxu0 0.0
    %1537 = vmatprep.subr.mxu0 0.0
    %1538 = vmatpush1.msra.mxu0 0.0
    %1539 = vmatprep.subr.mxu0 0.0
    %1540 = vmatpush1.msra.mxu0 0.0
    %1541 = vmatprep.subr.mxu0 0.0
    %1542 = vmatpush1.msra.mxu0 0.0
    %1543 = vmatprep.subr.mxu0 0.0
    %1544 = vmatpush1.msra.mxu0 0.0
    %1545 = vmatprep.subr.mxu0 0.0
    %1546 = vmatpush1.msra.mxu0 0.0
    %1547 = vmatprep.subr.mxu0 0.0
    %1548 = vmatpush1.msra.mxu0 0.0
    %1549 = vmatprep.subr.mxu0 0.0
    %1550 = vmatpush1.msra.mxu0 0.0
    %1551 = vmatprep.subr.mxu0 0.0
    %1552 = vmatpush1.msra.mxu0 0.0
    %1553 = vmatprep.mubr.f32.mxu0 0.0
    %1554 = vmatmul.mubr.f32.gmra.mrb[0].mxu0 %v1416
    %v1555 = vpop.f32.mrb[0].mxu0
    %v1556 = vadd.f32 %v1412, %v1555
    %v1557 = vpop.f32.mrb[0].mxu0
    %v1558 = vadd.f32 %v1412, %v1557
    %1559 = vdwg.mxu0
    %v1560 = vmax.f32 %v1485, 0.0
    %v1561 = vmax.f32 %v1487, 0.0
    %v1562 = vmax.f32 %v1556, 0.0
    %v1563 = vmax.f32 %v1558, 0.0
    %v1564 = vld [vmem:[%s4 + $0x30] sm:$0xff]
    %1565 = vset.pattern.permute.xlu0 3
    %1566 = vperm.xlu0 %1565, %v681
    %v1567 = vpop.permute.xlu0 %1566
    %v1570 = vsel %vm977, %v1564, 0
    %1572 = vmatprep.subr.mxu0 %v1561
    %1573 = vmatpush1.msra.mxu0 %v1560
    %1574 = vmatprep.subr.mxu0 0.0
    %1575 = vmatpush1.msra.mxu0 0.0
    %1576 = vmatprep.subr.mxu0 0.0
    %1577 = vmatpush1.msra.mxu0 0.0
    %1578 = vmatprep.subr.mxu0 0.0
    %1579 = vmatpush1.msra.mxu0 0.0
    %1580 = vmatprep.subr.mxu0 0.0
    %1581 = vmatpush1.msra.mxu0 0.0
    %1582 = vmatprep.subr.mxu0 0.0
    %1583 = vmatpush1.msra.mxu0 0.0
    %1584 = vmatprep.subr.mxu0 0.0
    %1585 = vmatpush1.msra.mxu0 0.0
    %1586 = vmatprep.subr.mxu0 0.0
    %1587 = vmatpush1.msra.mxu0 0.0
    %1588 = vmatprep.subr.mxu0 0.0
    %1589 = vmatpush1.msra.mxu0 0.0
    %1590 = vmatprep.subr.mxu0 0.0
    %1591 = vmatpush1.msra.mxu0 0.0
    %1592 = vmatprep.subr.mxu0 0.0
    %1593 = vmatpush1.msra.mxu0 0.0
    %1594 = vmatprep.subr.mxu0 0.0
    %1595 = vmatpush1.msra.mxu0 0.0
    %1596 = vmatprep.subr.mxu0 0.0
    %1597 = vmatpush1.msra.mxu0 0.0
    %1598 = vmatprep.subr.mxu0 0.0
    %1599 = vmatpush1.msra.mxu0 0.0
    %1600 = vmatprep.subr.mxu0 0.0
    %1601 = vmatpush1.msra.mxu0 0.0
    %1602 = vmatprep.subr.mxu0 0.0
    %1603 = vmatpush1.msra.mxu0 0.0
    %1604 = vmatprep.subr.mxu0 0.0
    %1605 = vmatpush1.msra.mxu0 0.0
    %1606 = vmatprep.subr.mxu0 0.0
    %1607 = vmatpush1.msra.mxu0 0.0
    %1608 = vmatprep.subr.mxu0 0.0
    %1609 = vmatpush1.msra.mxu0 0.0
    %1610 = vmatprep.subr.mxu0 0.0
    %1611 = vmatpush1.msra.mxu0 0.0
    %1612 = vmatprep.subr.mxu0 0.0
    %1613 = vmatpush1.msra.mxu0 0.0
    %1614 = vmatprep.subr.mxu0 0.0
    %1615 = vmatpush1.msra.mxu0 0.0
    %1616 = vmatprep.subr.mxu0 0.0
    %1617 = vmatpush1.msra.mxu0 0.0
    %1618 = vmatprep.subr.mxu0 0.0
    %1619 = vmatpush1.msra.mxu0 0.0
    %1620 = vmatprep.subr.mxu0 0.0
    %1621 = vmatpush1.msra.mxu0 0.0
    %1622 = vmatprep.subr.mxu0 0.0
    %1623 = vmatpush1.msra.mxu0 0.0
    %1624 = vmatprep.subr.mxu0 0.0
    %1625 = vmatpush1.msra.mxu0 0.0
    %1626 = vmatprep.subr.mxu0 0.0
    %1627 = vmatpush1.msra.mxu0 0.0
    %1628 = vmatprep.subr.mxu0 0.0
    %1629 = vmatpush1.msra.mxu0 0.0
    %1630 = vmatprep.subr.mxu0 0.0
    %1631 = vmatpush1.msra.mxu0 0.0
    %1632 = vmatprep.subr.mxu0 0.0
    %1633 = vmatpush1.msra.mxu0 0.0
    %1634 = vmatprep.subr.mxu0 0.0
    %1635 = vmatpush1.msra.mxu0 0.0
    %1636 = vmatprep.mubr.f32.mxu0 0.0
    %1637 = vmatmul.mubr.f32.gmra.mrb[0].mxu0 %v1570
    %v1638 = vpop.f32.mrb[0].mxu0
    %v1639 = vadd.f32 %v1567, %v1638
    %v1640 = vpop.f32.mrb[0].mxu0
    %v1641 = vadd.f32 %v1567, %v1640
    %1642 = vdwg.mxu0
    %1643 = vmatprep.subr.mxu0 %v1563
    %1644 = vmatpush1.msra.mxu0 %v1562
    %1645 = vmatprep.subr.mxu0 0.0
    %1646 = vmatpush1.msra.mxu0 0.0
    %1647 = vmatprep.subr.mxu0 0.0
    %1648 = vmatpush1.msra.mxu0 0.0
    %1649 = vmatprep.subr.mxu0 0.0
    %1650 = vmatpush1.msra.mxu0 0.0
    %1651 = vmatprep.subr.mxu0 0.0
    %1652 = vmatpush1.msra.mxu0 0.0
    %1653 = vmatprep.subr.mxu0 0.0
    %1654 = vmatpush1.msra.mxu0 0.0
    %1655 = vmatprep.subr.mxu0 0.0
    %1656 = vmatpush1.msra.mxu0 0.0
    %1657 = vmatprep.subr.mxu0 0.0
    %1658 = vmatpush1.msra.mxu0 0.0
    %1659 = vmatprep.subr.mxu0 0.0
    %1660 = vmatpush1.msra.mxu0 0.0
    %1661 = vmatprep.subr.mxu0 0.0
    %1662 = vmatpush1.msra.mxu0 0.0
    %1663 = vmatprep.subr.mxu0 0.0
    %1664 = vmatpush1.msra.mxu0 0.0
    %1665 = vmatprep.subr.mxu0 0.0
    %1666 = vmatpush1.msra.mxu0 0.0
    %1667 = vmatprep.subr.mxu0 0.0
    %1668 = vmatpush1.msra.mxu0 0.0
    %1669 = vmatprep.subr.mxu0 0.0
    %1670 = vmatpush1.msra.mxu0 0.0
    %1671 = vmatprep.subr.mxu0 0.0
    %1672 = vmatpush1.msra.mxu0 0.0
    %1673 = vmatprep.subr.mxu0 0.0
    %1674 = vmatpush1.msra.mxu0 0.0
    %1675 = vmatprep.subr.mxu0 0.0
    %1676 = vmatpush1.msra.mxu0 0.0
    %1677 = vmatprep.subr.mxu0 0.0
    %1678 = vmatpush1.msra.mxu0 0.0
    %1679 = vmatprep.subr.mxu0 0.0
    %1680 = vmatpush1.msra.mxu0 0.0
    %1681 = vmatprep.subr.mxu0 0.0
    %1682 = vmatpush1.msra.mxu0 0.0
    %1683 = vmatprep.subr.mxu0 0.0
    %1684 = vmatpush1.msra.mxu0 0.0
    %1685 = vmatprep.subr.mxu0 0.0
    %1686 = vmatpush1.msra.mxu0 0.0
    %1687 = vmatprep.subr.mxu0 0.0
    %1688 = vmatpush1.msra.mxu0 0.0
    %1689 = vmatprep.subr.mxu0 0.0
    %1690 = vmatpush1.msra.mxu0 0.0
    %1691 = vmatprep.subr.mxu0 0.0
    %1692 = vmatpush1.msra.mxu0 0.0
    %1693 = vmatprep.subr.mxu0 0.0
    %1694 = vmatpush1.msra.mxu0 0.0
    %1695 = vmatprep.subr.mxu0 0.0
    %1696 = vmatpush1.msra.mxu0 0.0
    %1697 = vmatprep.subr.mxu0 0.0
    %1698 = vmatpush1.msra.mxu0 0.0
    %1699 = vmatprep.subr.mxu0 0.0
    %1700 = vmatpush1.msra.mxu0 0.0
    %1701 = vmatprep.subr.mxu0 0.0
    %1702 = vmatpush1.msra.mxu0 0.0
    %1703 = vmatprep.subr.mxu0 0.0
    %1704 = vmatpush1.msra.mxu0 0.0
    %1705 = vmatprep.subr.mxu0 0.0
    %1706 = vmatpush1.msra.mxu0 0.0
    %1707 = vmatprep.mubr.f32.mxu0 0.0
    %1708 = vmatmul.mubr.f32.gmra.mrb[0].mxu0 %v1570
    %v1709 = vpop.f32.mrb[0].mxu0
    %v1710 = vadd.f32 %v1567, %v1709
    %v1711 = vpop.f32.mrb[0].mxu0
    %v1712 = vadd.f32 %v1567, %v1711
    %1713 = vdwg.mxu0
    %v1714 = vmax.f32 %v1639, 0.0
    %v1715 = vmax.f32 %v1641, 0.0
    %v1716 = vmax.f32 %v1710, 0.0
    %v1717 = vmax.f32 %v1712, 0.0
    %v1718 = vadd.f32 %v1714, %v93
    %v1719 = vadd.f32 %v1715, %v94
    %v1720 = vadd.f32 %v1716, %v95
    %v1721 = vadd.f32 %v1717, %v96
    %v1722 = vld [vmem:[%s4 + $0x38] sm:$0xff]
    %1723 = vset.pattern.permute.xlu0 4
    %1724 = vperm.xlu0 %1723, %v681
    %v1725 = vpop.permute.xlu0 %1724
    %v1728 = vsel %vm977, %v1722, 0
    %1730 = vmatprep.subr.mxu0 %v1719
    %1731 = vmatpush1.msra.mxu0 %v1718
    %1732 = vmatprep.subr.mxu0 0.0
    %1733 = vmatpush1.msra.mxu0 0.0
    %1734 = vmatprep.subr.mxu0 0.0
    %1735 = vmatpush1.msra.mxu0 0.0
    %1736 = vmatprep.subr.mxu0 0.0
    %1737 = vmatpush1.msra.mxu0 0.0
    %1738 = vmatprep.subr.mxu0 0.0
    %1739 = vmatpush1.msra.mxu0 0.0
    %1740 = vmatprep.subr.mxu0 0.0
    %1741 = vmatpush1.msra.mxu0 0.0
    %1742 = vmatprep.subr.mxu0 0.0
    %1743 = vmatpush1.msra.mxu0 0.0
    %1744 = vmatprep.subr.mxu0 0.0
    %1745 = vmatpush1.msra.mxu0 0.0
    %1746 = vmatprep.subr.mxu0 0.0
    %1747 = vmatpush1.msra.mxu0 0.0
    %1748 = vmatprep.subr.mxu0 0.0
    %1749 = vmatpush1.msra.mxu0 0.0
    %1750 = vmatprep.subr.mxu0 0.0
    %1751 = vmatpush1.msra.mxu0 0.0
    %1752 = vmatprep.subr.mxu0 0.0
    %1753 = vmatpush1.msra.mxu0 0.0
    %1754 = vmatprep.subr.mxu0 0.0
    %1755 = vmatpush1.msra.mxu0 0.0
    %1756 = vmatprep.subr.mxu0 0.0
    %1757 = vmatpush1.msra.mxu0 0.0
    %1758 = vmatprep.subr.mxu0 0.0
    %1759 = vmatpush1.msra.mxu0 0.0
    %1760 = vmatprep.subr.mxu0 0.0
    %1761 = vmatpush1.msra.mxu0 0.0
    %1762 = vmatprep.subr.mxu0 0.0
    %1763 = vmatpush1.msra.mxu0 0.0
    %1764 = vmatprep.subr.mxu0 0.0
    %1765 = vmatpush1.msra.mxu0 0.0
    %1766 = vmatprep.subr.mxu0 0.0
    %1767 = vmatpush1.msra.mxu0 0.0
    %1768 = vmatprep.subr.mxu0 0.0
    %1769 = vmatpush1.msra.mxu0 0.0
    %1770 = vmatprep.subr.mxu0 0.0
    %1771 = vmatpush1.msra.mxu0 0.0
    %1772 = vmatprep.subr.mxu0 0.0
    %1773 = vmatpush1.msra.mxu0 0.0
    %1774 = vmatprep.subr.mxu0 0.0
    %1775 = vmatpush1.msra.mxu0 0.0
    %1776 = vmatprep.subr.mxu0 0.0
    %1777 = vmatpush1.msra.mxu0 0.0
    %1778 = vmatprep.subr.mxu0 0.0
    %1779 = vmatpush1.msra.mxu0 0.0
    %1780 = vmatprep.subr.mxu0 0.0
    %1781 = vmatpush1.msra.mxu0 0.0
    %1782 = vmatprep.subr.mxu0 0.0
    %1783 = vmatpush1.msra.mxu0 0.0
    %1784 = vmatprep.subr.mxu0 0.0
    %1785 = vmatpush1.msra.mxu0 0.0
    %1786 = vmatprep.subr.mxu0 0.0
    %1787 = vmatpush1.msra.mxu0 0.0
    %1788 = vmatprep.subr.mxu0 0.0
    %1789 = vmatpush1.msra.mxu0 0.0
    %1790 = vmatprep.subr.mxu0 0.0
    %1791 = vmatpush1.msra.mxu0 0.0
    %1792 = vmatprep.subr.mxu0 0.0
    %1793 = vmatpush1.msra.mxu0 0.0
    %1794 = vmatprep.mubr.f32.mxu0 0.0
    %1795 = vmatmul.mubr.f32.gmra.mrb[0].mxu0 %v1728
    %v1796 = vpop.f32.mrb[0].mxu0
    %v1797 = vadd.f32 %v1725, %v1796
    %v1798 = vpop.f32.mrb[0].mxu0
    %v1799 = vadd.f32 %v1725, %v1798
    %1800 = vdwg.mxu0
    %1801 = vmatprep.subr.mxu0 %v1721
    %1802 = vmatpush1.msra.mxu0 %v1720
    %1803 = vmatprep.subr.mxu0 0.0
    %1804 = vmatpush1.msra.mxu0 0.0
    %1805 = vmatprep.subr.mxu0 0.0
    %1806 = vmatpush1.msra.mxu0 0.0
    %1807 = vmatprep.subr.mxu0 0.0
    %1808 = vmatpush1.msra.mxu0 0.0
    %1809 = vmatprep.subr.mxu0 0.0
    %1810 = vmatpush1.msra.mxu0 0.0
    %1811 = vmatprep.subr.mxu0 0.0
    %1812 = vmatpush1.msra.mxu0 0.0
    %1813 = vmatprep.subr.mxu0 0.0
    %1814 = vmatpush1.msra.mxu0 0.0
    %1815 = vmatprep.subr.mxu0 0.0
    %1816 = vmatpush1.msra.mxu0 0.0
    %1817 = vmatprep.subr.mxu0 0.0
    %1818 = vmatpush1.msra.mxu0 0.0
    %1819 = vmatprep.subr.mxu0 0.0
    %1820 = vmatpush1.msra.mxu0 0.0
    %1821 = vmatprep.subr.mxu0 0.0
    %1822 = vmatpush1.msra.mxu0 0.0
    %1823 = vmatprep.subr.mxu0 0.0
    %1824 = vmatpush1.msra.mxu0 0.0
    %1825 = vmatprep.subr.mxu0 0.0
    %1826 = vmatpush1.msra.mxu0 0.0
    %1827 = vmatprep.subr.mxu0 0.0
    %1828 = vmatpush1.msra.mxu0 0.0
    %1829 = vmatprep.subr.mxu0 0.0
    %1830 = vmatpush1.msra.mxu0 0.0
    %1831 = vmatprep.subr.mxu0 0.0
    %1832 = vmatpush1.msra.mxu0 0.0
    %1833 = vmatprep.subr.mxu0 0.0
    %1834 = vmatpush1.msra.mxu0 0.0
    %1835 = vmatprep.subr.mxu0 0.0
    %1836 = vmatpush1.msra.mxu0 0.0
    %1837 = vmatprep.subr.mxu0 0.0
    %1838 = vmatpush1.msra.mxu0 0.0
    %1839 = vmatprep.subr.mxu0 0.0
    %1840 = vmatpush1.msra.mxu0 0.0
    %1841 = vmatprep.subr.mxu0 0.0
    %1842 = vmatpush1.msra.mxu0 0.0
    %1843 = vmatprep.subr.mxu0 0.0
    %1844 = vmatpush1.msra.mxu0 0.0
    %1845 = vmatprep.subr.mxu0 0.0
    %1846 = vmatpush1.msra.mxu0 0.0
    %1847 = vmatprep.subr.mxu0 0.0
    %1848 = vmatpush1.msra.mxu0 0.0
    %1849 = vmatprep.subr.mxu0 0.0
    %1850 = vmatpush1.msra.mxu0 0.0
    %1851 = vmatprep.subr.mxu0 0.0
    %1852 = vmatpush1.msra.mxu0 0.0
    %1853 = vmatprep.subr.mxu0 0.0
    %1854 = vmatpush1.msra.mxu0 0.0
    %1855 = vmatprep.subr.mxu0 0.0
    %1856 = vmatpush1.msra.mxu0 0.0
    %1857 = vmatprep.subr.mxu0 0.0
    %1858 = vmatpush1.msra.mxu0 0.0
    %1859 = vmatprep.subr.mxu0 0.0
    %1860 = vmatpush1.msra.mxu0 0.0
    %1861 = vmatprep.subr.mxu0 0.0
    %1862 = vmatpush1.msra.mxu0 0.0
    %1863 = vmatprep.subr.mxu0 0.0
    %1864 = vmatpush1.msra.mxu0 0.0
    %1865 = vmatprep.mubr.f32.mxu0 0.0
    %1866 = vmatmul.mubr.f32.gmra.mrb[0].mxu0 %v1728
    %v1867 = vpop.f32.mrb[0].mxu0
    %v1868 = vadd.f32 %v1725, %v1867
    %v1869 = vpop.f32.mrb[0].mxu0
    %v1870 = vadd.f32 %v1725, %v1869
    %1871 = vdwg.mxu0
    %1872 = vst [vmem:[#allocation2] sm:$0xff] %v1797
    %1873 = vst [vmem:[#allocation2 + $0x8] sm:$0xff] %v1799
    %1874 = vst [vmem:[#allocation2 + $0x10] sm:$0xff] %v1868
    %1875 = vst [vmem:[#allocation2 + $0x18] sm:$0xff] %v1870
    // Predicated region
    $region22: #{tpu_custom_call.1} parent=1 // pred_check
      _
    $region23: #{tpu_custom_call.1} parent=1 // pred_check_branch
      %1877 = sbr.rel (0) target = $region25
    $region24: #{tpu_custom_call.1} parent=1 // pred_region
      %s1879 = ssub.s32 512, 512
      %1880 = vsyncadd [#allocation3], %s1879
      %s1882 = sshll.u32 [#allocation2], 4
      %s1883 = int_to_ptr.vmem [resolvable:$true] %s1882
      %1885 = dma.vmem_to_hbm [thread:$0]  %s1883, 512, %s5, [#allocation3]
    $region25: #{tpu_custom_call.1} parent=1 // pred_fallthru
      _
    // Predicated region
    $region26: #{tpu_custom_call.1} parent=1 // pred_check
      _
    $region27: #{tpu_custom_call.1} parent=1 // pred_check_branch
      %1887 = sbr.rel (0) target = $region29
    $region28: #{tpu_custom_call.1} parent=1 // pred_region
      %1888 = dma.done [#allocation3], 512
    $region29: #{tpu_custom_call.1} parent=1 // pred_fallthru
      _
    %1889 = vsyncpa [#allocation3], 1

</llo_original>
